<compile_context>
chip_gen: v7x
topology: tpu7x:2x2x1
jax: 0.10.0
libtpu: 0.0.40
codegen_flags: <defaults>
</compile_context>

<pallas_src>
import functools
import math

import jax
import jax.numpy as jnp
from jax import lax
from jax.experimental import pallas as pl
from jax.experimental.pallas import tpu as pltpu

LOG_2PI = math.log(2.0 * math.pi)


# ----------------------------------------------------------------------------
# small helpers
# ----------------------------------------------------------------------------
def full_spec(shape):
    nd = len(shape)
    return pl.BlockSpec(shape, lambda i, _nd=nd: (0,) * _nd)


def matrix_to_rotation_6d(R):
    # first two rows of the rotation matrix, flattened (pytorch3d convention)
    return R[..., :2, :].reshape(*R.shape[:-2], 6)


def rotation_6d_to_matrix(d6):
    a1, a2 = d6[..., 0:3], d6[..., 3:6]
    b1 = a1 / jnp.linalg.norm(a1, axis=-1, keepdims=True)
    b2 = a2 - jnp.sum(b1 * a2, axis=-1, keepdims=True) * b1
    b2 = b2 / jnp.linalg.norm(b2, axis=-1, keepdims=True)
    b3 = jnp.cross(b1, b2)
    return jnp.stack([b1, b2, b3], axis=-2)


def _safe_recip(z, eps=1e-6):
    """1/z with a sign-preserving clamp away from 0; goes to the EUP slot (approx vrcp)."""
    za = jnp.maximum(jnp.abs(z), eps)
    zs = jnp.where(z >= 0.0, za, -za)
    return pl.reciprocal(zs, approx=True)


# ----------------------------------------------------------------------------
# the single fused Pallas kernel
# ----------------------------------------------------------------------------
def _fused_flow_loss_kernel(
        gt_p6d_ref, gt_gamma_ref, th_ctx_ref, ga_ctx_ref,
        w_theta_ref, b_theta_ref, w_gamma_ref, b_gamma_ref,
        eps_t_ref, eps_g_ref,
        w_smpl_ref, w_dec_ref, w_r6_ref, w_t3_ref,
        misc_ref,
        out_ref,
        *, num_samples, num_kpts):
    f32 = jnp.float32
    S = num_samples
    K = num_kpts
    b = gt_p6d_ref.shape[0]
    Dt = gt_p6d_ref.shape[1]              # 6 * J
    Dg = gt_gamma_ref.shape[1]
    J = Dt // 6
    N = eps_t_ref.shape[0]                # b * num_samples
    Doff = w_dec_ref.shape[1]

    # ---- 1. conditional-Gaussian flow heads (bf16 MXU dots, f32 accumulate) ----------------
    # TODO(synk): the real StackFlow conditional normalizing flow (glow-style) is external;
    # replaced by a single conditional affine (Gaussian) flow with deterministic weights.
    h_t = jnp.dot(th_ctx_ref[...].astype(jnp.bfloat16),
                  w_theta_ref[...].astype(jnp.bfloat16),
                  preferred_element_type=f32) + b_theta_ref[...]           # (b, 2*Dt)
    h_g = jnp.dot(ga_ctx_ref[...].astype(jnp.bfloat16),
                  w_gamma_ref[...].astype(jnp.bfloat16),
                  preferred_element_type=f32) + b_gamma_ref[...]           # (b, 2*Dg)

    mu_t = h_t[:, :Dt]
    ls_t = jnp.clip(h_t[:, Dt:], -10.0, 10.0)      # clamp log-sigma -> no exp overflow
    mu_g = h_g[:, :Dg]
    ls_g = jnp.clip(h_g[:, Dg:], -10.0, 10.0)

    # ---- 2. log_prob of the (noisy) gt under the flow -> NLL losses ------------------------
    z_t = (gt_p6d_ref[...] - mu_t) * jnp.exp(-ls_t)
    z_g = (gt_gamma_ref[...] - mu_g) * jnp.exp(-ls_g)
    loss_theta_nll = (0.5 * jnp.sum(z_t * z_t) + jnp.sum(ls_t)) / b + 0.5 * Dt * LOG_2PI
    loss_gamma_nll = (0.5 * jnp.sum(z_g * z_g) + jnp.sum(ls_g)) / b + 0.5 * Dg * LOG_2PI

    # ---- 3. batch -> (batch*num_samples) broadcast via one tiny one-hot matmul -------------
    # (replaces all the jnp.repeat calls of the previous version; ordering = repeat ordering)
    row = lax.broadcasted_iota(jnp.int32, (N, b), 0)
    col = lax.broadcasted_iota(jnp.int32, (N, b), 1)
    rep = jnp.logical_and(row >= col * S, row < (col + 1) * S).astype(f32)   # (N, b)

    h_t_rep = jnp.dot(rep, h_t, preferred_element_type=f32)                  # (N, 2*Dt)
    h_g_rep = jnp.dot(rep, h_g, preferred_element_type=f32)                  # (N, 2*Dg)
    misc = jnp.dot(rep, misc_ref[...], preferred_element_type=f32)           # (N, P)

    mu_tr = h_t_rep[:, :Dt]
    ls_tr = jnp.clip(h_t_rep[:, Dt:], -10.0, 10.0)
    mu_gr = h_g_rep[:, :Dg]
    ls_gr = jnp.clip(h_g_rep[:, Dg:], -10.0, 10.0)

    # flow samples (column-grouped 6d layout: [a1x*J | a1y*J | a1z*J | a2x*J | a2y*J | a2z*J])
    theta_s = mu_tr + jnp.exp(ls_tr) * eps_t_ref[...]                        # (N, 6*J)
    gamma_s = mu_gr + jnp.exp(ls_gr) * eps_g_ref[...]                        # (N, Dg)

    # unpack the per-batch "misc" row (now per-sample)
    betas = misc[:, 0:10]
    cam_tx = misc[:, 10:11]
    cam_ty = misc[:, 11:12]
    cam_tz = misc[:, 12:13]
    fx = misc[:, 13:14]
    fy = misc[:, 14:15]
    gtj_u = misc[:, 15:15 + J]
    gtj_v = misc[:, 15 + J:15 + 2 * J]
    o = 15 + 2 * J
    kx = misc[:, o:o + K]
    ky = misc[:, o + K:o + 2 * K]
    kz = misc[:, o + 2 * K:o + 3 * K]
    gtk_u = misc[:, o + 3 * K:o + 4 * K]
    gtk_v = misc[:, o + 4 * K:o + 5 * K]
    kw = misc[:, o + 5 * K:o + 6 * K]
    lab_dec = misc[:, o + 6 * K:o + 6 * K + Doff]

    # ---- 4. 6d Gram / orthonormality loss on the raw sampled 6d ----------------------------
    a1x = theta_s[:, 0 * J:1 * J]
    a1y = theta_s[:, 1 * J:2 * J]
    a1z = theta_s[:, 2 * J:3 * J]
    a2x = theta_s[:, 3 * J:4 * J]
    a2y = theta_s[:, 4 * J:5 * J]
    a2z = theta_s[:, 5 * J:6 * J]
    aa = a1x * a1x + a1y * a1y + a1z * a1z
    ab = a1x * a2x + a1y * a2y + a1z * a2z
    bb = a2x * a2x + a2y * a2y + a2z * a2z
    loss_pose_6d = jnp.sum((aa - 1.0) ** 2 + 2.0 * ab * ab + (bb - 1.0) ** 2) / (4.0 * N * J)

    # ---- 5. 6d -> rotation matrices (vectorized over all N*J joints, pure VPU/EUP) ---------
    inv_n1 = lax.rsqrt(aa + 1e-12)
    b1x, b1y, b1z = a1x * inv_n1, a1y * inv_n1, a1z * inv_n1
    dd = b1x * a2x + b1y * a2y + b1z * a2z
    u2x, u2y, u2z = a2x - dd * b1x, a2y - dd * b1y, a2z - dd * b1z
    inv_n2 = lax.rsqrt(u2x * u2x + u2y * u2y + u2z * u2z + 1e-12)
    b2x, b2y, b2z = u2x * inv_n2, u2y * inv_n2, u2z * inv_n2
    b3x = b1y * b2z - b1z * b2y
    b3y = b1z * b2x - b1x * b2z
    b3z = b1x * b2y - b1y * b2x

    # ---- 6. SMPL stand-in joint regressor (one MXU dot over all samples) -------------------
    # TODO(synk): full SMPL-H LBS forward (shape blendshapes + skinning) is not implemented;
    # a deterministic linear joint regressor on (rotmats, betas) is used instead.
    smpl_feat = jnp.concatenate(
        [b1x, b1y, b1z, b2x, b2y, b2z, b3x, b3y, b3z, betas], axis=1)        # (N, 9J+10)
    j3d = jnp.dot(smpl_feat, w_smpl_ref[...], preferred_element_type=f32)    # (N, 3J) [jx|jy|jz]
    jx = j3d[:, 0:J]
    jy = j3d[:, J:2 * J]
    jz = j3d[:, 2 * J:3 * J]
    jx = jx - jx[:, 0:1]
    jy = jy - jy[:, 0:1]
    jz = jz - jz[:, 0:1]

    # ---- 7. joint 2-D reprojection L1 -------------------------------------------------------
    px = jx + cam_tx
    py = jy + cam_ty
    pz = jz + cam_tz
    inv_z = _safe_recip(pz)
    u2d = px * inv_z * fx
    v2d = py * inv_z * fy
    loss_joint_2d = jnp.sum(jnp.abs(u2d - gtj_u) + jnp.abs(v2d - gtj_v)) / (2.0 * N * J)

    # ---- 8. HOOffset decode stand-in + object pose ------------------------------------------
    # TODO(synk): real HOOffset decode uses SMPL anchors + per-object PCA; linear stand-in here.
    offs = jnp.dot(gamma_s, w_dec_ref[...], preferred_element_type=f32) + lab_dec   # (N, Doff)
    rel6 = jnp.dot(offs, w_r6_ref[...], preferred_element_type=f32)                 # (N, 6)
    relT = jnp.dot(offs, w_t3_ref[...], preferred_element_type=f32)                 # (N, 3)

    # 6d -> rotmat for the single relative object rotation
    r1x, r1y, r1z = rel6[:, 0:1], rel6[:, 1:2], rel6[:, 2:3]
    r2x, r2y, r2z = rel6[:, 3:4], rel6[:, 4:5], rel6[:, 5:6]
    inv_m1 = lax.rsqrt(r1x * r1x + r1y * r1y + r1z * r1z + 1e-12)
    c1x, c1y, c1z = r1x * inv_m1, r1y * inv_m1, r1z * inv_m1
    de = c1x * r2x + c1y * r2y + c1z * r2z
    w2x, w2y, w2z = r2x - de * c1x, r2y - de * c1y, r2z - de * c1z
    inv_m2 = lax.rsqrt(w2x * w2x + w2y * w2y + w2z * w2z + 1e-12)
    c2x, c2y, c2z = w2x * inv_m2, w2y * inv_m2, w2z * inv_m2
    c3x = c1y * c2z - c1z * c2y
    c3y = c1z * c2x - c1x * c2z
    c3z = c1x * c2y - c1y * c2x

    # global orient = joint-0 rotation (rows of the joint-0 rotmat)
    g11, g12, g13 = b1x[:, 0:1], b1y[:, 0:1], b1z[:, 0:1]
    g21, g22, g23 = b2x[:, 0:1], b2y[:, 0:1], b2z[:, 0:1]
    g31, g32, g33 = b3x[:, 0:1], b3y[:, 0:1], b3z[:, 0:1]

    # obj_R = G @ rel_R (per-row 3x3, fully elementwise)
    o11 = g11 * c1x + g12 * c2x + g13 * c3x
    o12 = g11 * c1y + g12 * c2y + g13 * c3y
    o13 = g11 * c1z + g12 * c2z + g13 * c3z
    o21 = g21 * c1x + g22 * c2x + g23 * c3x
    o22 = g21 * c1y + g22 * c2y + g23 * c3y
    o23 = g21 * c1z + g22 * c2z + g23 * c3z
    o31 = g31 * c1x + g32 * c2x + g33 * c3x
    o32 = g31 * c1y + g32 * c2y + g33 * c3y
    o33 = g31 * c1z + g32 * c2z + g33 * c3z

    t0, t1, t2 = relT[:, 0:1], relT[:, 1:2], relT[:, 2:3]
    otx = g11 * t0 + g12 * t1 + g13 * t2 + cam_tx
    oty = g21 * t0 + g22 * t1 + g23 * t2 + cam_ty
    otz = g31 * t0 + g32 * t1 + g33 * t2 + cam_tz

    # ---- 9. weighted object keypoint reprojection L1 ----------------------------------------
    qx = o11 * kx + o12 * ky + o13 * kz + otx
    qy = o21 * kx + o22 * ky + o23 * kz + oty
    qz = o31 * kx + o32 * ky + o33 * kz + otz
    inv_qz = _safe_recip(qz)
    uo = qx * inv_qz * fx
    vo = qy * inv_qz * fy
    l1 = jnp.abs(uo - gtk_u) + jnp.abs(vo - gtk_v)
    obj_loss = jnp.sum(kw * l1) / (2.0 * jnp.sum(kw) + 1e-9)

    # ---- 10. pack the 5 scalar losses into one lane-dense (1,128) row ------------------------
    lane = lax.broadcasted_iota(jnp.int32, out_ref.shape, 1)
    out_ref[...] = (jnp.where(lane == 0, loss_theta_nll, 0.0)
                    + jnp.where(lane == 1, loss_gamma_nll, 0.0)
                    + jnp.where(lane == 2, loss_joint_2d, 0.0)
                    + jnp.where(lane == 3, loss_pose_6d, 0.0)
                    + jnp.where(lane == 4, obj_loss, 0.0)).astype(out_ref.dtype)


# ----------------------------------------------------------------------------
# FlowLoss forward (wrapper: input prep + one pallas_call)
# ----------------------------------------------------------------------------
def flow_loss_forward(params, preds, targets, rng, num_samples=4, img_size=256.0):
    human_features = preds['human_features']
    hoi_features = preds['hoi_features']
    gt_smpl_rotmat = targets['smpl_pose_rotmat']            # (b, 22, 3, 3)
    b = gt_smpl_rotmat.shape[0]
    J = gt_smpl_rotmat.shape[1]

    # 6d pose in component-grouped column order ([a1x*J | a1y*J | ... | a2z*J]).  This is a
    # fixed permutation of the standard per-joint layout; the flow / joint-regressor stand-ins
    # use random weights so the permutation is semantically neutral, and it keeps per-joint
    # math lane-dense inside the kernel.
    gt_pose_6d = jnp.transpose(matrix_to_rotation_6d(gt_smpl_rotmat), (0, 2, 1)).reshape(b, 6 * J)

    object_labels = targets['object_labels']
    smpl_body_pose_rotmat = gt_smpl_rotmat[:, 1:]
    smpl_betas = targets['smpl_betas']
    object_rel_rotmat = targets['object_rel_rotmat']
    object_rel_trans = targets['object_rel_trans']

    # HOOffset.encode stand-in (deterministic linear encoder)
    # TODO(synk): real HOOffset uses SMPL anchor offsets + per-object PCA; not reproducible here.
    enc_feat = jnp.concatenate([
        smpl_betas,
        matrix_to_rotation_6d(smpl_body_pose_rotmat).reshape(b, -1),
        object_rel_rotmat.reshape(b, 9),
        object_rel_trans], axis=-1)
    gt_gamma = enc_feat @ params['W_enc'] + params['label_enc'][object_labels]

    k1, k2, k3, k4 = jax.random.split(rng, 4)
    gt_pose_6d = gt_pose_6d + jax.random.normal(k1, gt_pose_6d.shape, jnp.float32) * 0.001
    gt_gamma = gt_gamma + jax.random.normal(k2, gt_gamma.shape, jnp.float32) * 0.01

    theta_ctx = human_features
    gamma_ctx = hoi_features + params['label_emb'][object_labels]

    N = b * num_samples
    D_theta = gt_pose_6d.shape[-1]
    D_gamma = gt_gamma.shape[-1]
    eps_theta = jax.random.normal(k3, (N, D_theta), jnp.float32)
    eps_gamma = jax.random.normal(k4, (N, D_gamma), jnp.float32)

    # per-batch camera translation (original StackFlow formula) -- (b,3) scalar math
    pred_cam = preds['pred_cam']
    focal = targets['focal_length']
    eps = 1e-9
    cam_t = jnp.stack([
        pred_cam[:, 1] / (pred_cam[:, 0] + eps),
        pred_cam[:, 2] * focal[:, 0] / (focal[:, 1] * pred_cam[:, 0] + eps),
        focal[:, 0] / (img_size * pred_cam[:, 0] + eps)], axis=-1)
    focal_n = focal / img_size

    gt_j2d = targets['person_joint_2d']                      # (b, J, 2)
    obj_kpts = params['object_keypoints'][object_labels]     # (b, K, 3)
    gt_k2d = targets['object_kpts_2d']                       # (b, K, 2)
    kw = targets['object_kpts_weights']                      # (b, K)
    K = kw.shape[-1]
    lab_dec = params['label_dec'][object_labels]             # (b, D_OFF)

    # pack every per-batch quantity the samples need into one row-matrix; the kernel expands
    # it to N = b*num_samples rows with a single one-hot matmul (no jnp.repeat / HBM blowup).
    misc = jnp.concatenate([
        preds['pred_betas'],                                  # 10
        cam_t,                                                # 3
        focal_n,                                              # 2
        gt_j2d[..., 0], gt_j2d[..., 1],                       # J + J
        obj_kpts[..., 0], obj_kpts[..., 1], obj_kpts[..., 2],  # 3K
        gt_k2d[..., 0], gt_k2d[..., 1],                       # 2K
        kw,                                                   # K
        lab_dec,                                              # D_OFF
    ], axis=-1).astype(jnp.float32)

    kernel = functools.partial(_fused_flow_loss_kernel,
                               num_samples=num_samples, num_kpts=K)
    args = (gt_pose_6d, gt_gamma, theta_ctx, gamma_ctx,
            params['W_theta'], params['b_theta'], params['W_gamma'], params['b_gamma'],
            eps_theta, eps_gamma,
            params['W_smpl'], params['W_dec'], params['W_R6'], params['W_T'],
            misc)

    out = pl.pallas_call(
        kernel,
        grid=(1,),
        in_specs=[full_spec(a.shape) for a in args],
        out_specs=full_spec((1, 128)),
        out_shape=jax.ShapeDtypeStruct((1, 128), jnp.float32),
        compiler_params=pltpu.CompilerParams(dimension_semantics=("arbitrary",)),
    )(*args)

    return {
        'loss_theta_nll': out[0, 0],
        'loss_gamma_nll': out[0, 1],
        'loss_joint_2d_sample': out[0, 2],
        'loss_pose_6d_samples': out[0, 3],
        'object_sample_reproj_loss': out[0, 4],
    }


# ----------------------------------------------------------------------------
# main
# ----------------------------------------------------------------------------
if __name__ == "__main__":
    b = 2
    num_samples = 4
    NUM_OBJ, K = 10, 8
    IMG_SIZE = 256.0
    C_FEAT = 64
    D_THETA = 22 * 6      # 132
    D_GAMMA = 32
    D_ENC = 10 + 21 * 6 + 9 + 3   # 148
    D_OFF = 64

    # deterministic "weights"
    pk = jax.random.PRNGKey(42)
    keys = jax.random.split(pk, 12)
    params = {
        'W_theta': jax.random.normal(keys[0], (C_FEAT, 2 * D_THETA), jnp.float32) * 0.02,
        'b_theta': jnp.zeros((1, 2 * D_THETA), jnp.float32),
        'W_gamma': jax.random.normal(keys[1], (C_FEAT, 2 * D_GAMMA), jnp.float32) * 0.02,
        'b_gamma': jnp.zeros((1, 2 * D_GAMMA), jnp.float32),
        'label_emb': jax.random.normal(keys[2], (NUM_OBJ, C_FEAT), jnp.float32) * 0.1,
        'W_enc': jax.random.normal(keys[3], (D_ENC, D_GAMMA), jnp.float32) * 0.05,
        'label_enc': jax.random.normal(keys[4], (NUM_OBJ, D_GAMMA), jnp.float32) * 0.05,
        'W_smpl': jax.random.normal(keys[5], (22 * 9 + 10, 22 * 3), jnp.float32) * 0.01,
        'W_dec': jax.random.normal(keys[6], (D_GAMMA, D_OFF), jnp.float32) * 0.05,
        'label_dec': jax.random.normal(keys[7], (NUM_OBJ, D_OFF), jnp.float32) * 0.05,
        'W_R6': jax.random.normal(keys[8], (D_OFF, 6), jnp.float32) * 0.2,
        'W_T': jax.random.normal(keys[9], (D_OFF, 3), jnp.float32) * 0.05,
        'object_keypoints': jax.random.normal(keys[10], (NUM_OBJ, K, 3), jnp.float32) * 0.2,
    }

    # deterministic example inputs
    key = jax.random.PRNGKey(0)
    ks = jax.random.split(key, 16)
    gt_pose6d_raw = jax.random.normal(ks[0], (b, 22, 6), jnp.float32)
    obj_rel_6d_raw = jax.random.normal(ks[1], (b, 6), jnp.float32)
    targets = {
        'smpl_pose_rotmat': rotation_6d_to_matrix(gt_pose6d_raw),         # (b, 22, 3, 3)
        'smpl_betas': jax.random.normal(ks[2], (b, 10), jnp.float32) * 0.5,
        'object_rel_rotmat': rotation_6d_to_matrix(obj_rel_6d_raw),       # (b, 3, 3)
        'object_rel_trans': jax.random.normal(ks[3], (b, 3), jnp.float32) * 0.1,
        'object_labels': jnp.array([1, 3], dtype=jnp.int32),
        'focal_length': jnp.full((b, 2), 1000.0, jnp.float32),
        'person_joint_2d': jax.random.normal(ks[4], (b, 22, 2), jnp.float32) * 0.1,
        'object_kpts_2d': jax.random.normal(ks[5], (b, K, 2), jnp.float32) * 0.1,
        'object_kpts_weights': jax.random.uniform(ks[6], (b, K), jnp.float32, 0.1, 1.0),
    }
    preds = {
        'human_features': jax.random.normal(ks[7], (b, C_FEAT), jnp.float32) * 0.1,
        'hoi_features': jax.random.normal(ks[8], (b, C_FEAT), jnp.float32) * 0.1,
        'pred_betas': jax.random.normal(ks[9], (b, 10), jnp.float32) * 0.5,
        'pred_cam': jnp.stack([
            1.0 + 0.1 * jax.random.uniform(ks[10], (b,), jnp.float32),
            0.1 * jax.random.normal(ks[11], (b,), jnp.float32),
            0.1 * jax.random.normal(ks[12], (b,), jnp.float32)], axis=-1),
    }

    losses = flow_loss_forward(params, preds, targets, ks[13],
                               num_samples=num_samples, img_size=IMG_SIZE)
    losses = jax.tree_util.tree_map(jax.block_until_ready, losses)

    ok = all(bool(jnp.isfinite(v)) for v in losses.values())
    if ok:
        print("KERNEL_OK")
    else:
        print("KERNEL_FAILED", losses)
</pallas_src>

<mosaic_0001>
module attributes {stable_mosaic.version = 11 : i64} {
  func.func @_fused_flow_loss_kernel(%arg0: i32, %arg1: memref<2x132xf32, #tpu.memory_space<vmem>>, %arg2: memref<2x32xf32, #tpu.memory_space<vmem>>, %arg3: memref<2x64xf32, #tpu.memory_space<vmem>>, %arg4: memref<2x64xf32, #tpu.memory_space<vmem>>, %arg5: memref<64x264xf32, #tpu.memory_space<vmem>>, %arg6: memref<1x264xf32, #tpu.memory_space<vmem>>, %arg7: memref<64x64xf32, #tpu.memory_space<vmem>>, %arg8: memref<1x64xf32, #tpu.memory_space<vmem>>, %arg9: memref<8x132xf32, #tpu.memory_space<vmem>>, %arg10: memref<8x32xf32, #tpu.memory_space<vmem>>, %arg11: memref<208x66xf32, #tpu.memory_space<vmem>>, %arg12: memref<32x64xf32, #tpu.memory_space<vmem>>, %arg13: memref<64x6xf32, #tpu.memory_space<vmem>>, %arg14: memref<64x3xf32, #tpu.memory_space<vmem>>, %arg15: memref<2x171xf32, #tpu.memory_space<vmem>>, %arg16: memref<1x128xf32, #tpu.memory_space<vmem>>) attributes {dimension_semantics = [#tpu.dimension_semantics<arbitrary>], iteration_bounds = array<i64: 1>, scalar_prefetch = 0 : i64, scratch_operands = 0 : i64, tpu.core_type = #tpu.core_type<tc>, window_params = [{pipeline_mode = #tpu.pipeline_mode<synchronous>, transform_indices = @transform_0, window_bounds = array<i64: 2, 132>}, {pipeline_mode = #tpu.pipeline_mode<synchronous>, transform_indices = @transform_1, window_bounds = array<i64: 2, 32>}, {pipeline_mode = #tpu.pipeline_mode<synchronous>, transform_indices = @transform_2, window_bounds = array<i64: 2, 64>}, {pipeline_mode = #tpu.pipeline_mode<synchronous>, transform_indices = @transform_3, window_bounds = array<i64: 2, 64>}, {pipeline_mode = #tpu.pipeline_mode<synchronous>, transform_indices = @transform_4, window_bounds = array<i64: 64, 264>}, {pipeline_mode = #tpu.pipeline_mode<synchronous>, transform_indices = @transform_5, window_bounds = array<i64: 1, 264>}, {pipeline_mode = #tpu.pipeline_mode<synchronous>, transform_indices = @transform_6, window_bounds = array<i64: 64, 64>}, {pipeline_mode = #tpu.pipeline_mode<synchronous>, transform_indices = @transform_7, window_bounds = array<i64: 1, 64>}, {pipeline_mode = #tpu.pipeline_mode<synchronous>, transform_indices = @transform_8, window_bounds = array<i64: 8, 132>}, {pipeline_mode = #tpu.pipeline_mode<synchronous>, transform_indices = @transform_9, window_bounds = array<i64: 8, 32>}, {pipeline_mode = #tpu.pipeline_mode<synchronous>, transform_indices = @transform_10, window_bounds = array<i64: 208, 66>}, {pipeline_mode = #tpu.pipeline_mode<synchronous>, transform_indices = @transform_11, window_bounds = array<i64: 32, 64>}, {pipeline_mode = #tpu.pipeline_mode<synchronous>, transform_indices = @transform_12, window_bounds = array<i64: 64, 6>}, {pipeline_mode = #tpu.pipeline_mode<synchronous>, transform_indices = @transform_13, window_bounds = array<i64: 64, 3>}, {pipeline_mode = #tpu.pipeline_mode<synchronous>, transform_indices = @transform_14, window_bounds = array<i64: 2, 171>}, {pipeline_mode = #tpu.pipeline_mode<synchronous>, transform_indices = @transform_15, window_bounds = array<i64: 1, 128>}]} {
    %c0 = arith.constant 0 : index
    %c0_0 = arith.constant 0 : index
    %0 = vector.load %arg3[%c0, %c0_0] : memref<2x64xf32, #tpu.memory_space<vmem>>, vector<2x64xf32>
    %1 = arith.truncf %0 : vector<2x64xf32> to vector<2x64xbf16>
    %c0_1 = arith.constant 0 : index
    %c0_2 = arith.constant 0 : index
    %2 = vector.load %arg5[%c0_1, %c0_2] : memref<64x264xf32, #tpu.memory_space<vmem>>, vector<64x264xf32>
    %3 = arith.truncf %2 : vector<64x264xf32> to vector<64x264xbf16>
    %cst = arith.constant dense<0.000000e+00> : vector<2x264xf32>
    %4 = tpu.matmul %1, %3, %cst {dimension_numbers = #tpu.dot_dimension_numbers<[1], [0], [0], [1], [0, 0, 1, 1], [], []>} : vector<2x64xbf16>, vector<64x264xbf16>, vector<2x264xf32> -> vector<2x264xf32>
    %c0_3 = arith.constant 0 : index
    %c0_4 = arith.constant 0 : index
    %5 = vector.load %arg6[%c0_3, %c0_4] : memref<1x264xf32, #tpu.memory_space<vmem>>, vector<1x264xf32>
    %6 = vector.broadcast %5 : vector<1x264xf32> to vector<2x264xf32>
    %7 = arith.addf %4, %6 : vector<2x264xf32>
    %c0_5 = arith.constant 0 : index
    %c0_6 = arith.constant 0 : index
    %8 = vector.load %arg4[%c0_5, %c0_6] : memref<2x64xf32, #tpu.memory_space<vmem>>, vector<2x64xf32>
    %9 = arith.truncf %8 : vector<2x64xf32> to vector<2x64xbf16>
    %c0_7 = arith.constant 0 : index
    %c0_8 = arith.constant 0 : index
    %10 = vector.load %arg7[%c0_7, %c0_8] : memref<64x64xf32, #tpu.memory_space<vmem>>, vector<64x64xf32>
    %11 = arith.truncf %10 : vector<64x64xf32> to vector<64x64xbf16>
    %cst_9 = arith.constant dense<0.000000e+00> : vector<2x64xf32>
    %12 = tpu.matmul %9, %11, %cst_9 {dimension_numbers = #tpu.dot_dimension_numbers<[1], [0], [0], [1], [0, 0, 1, 1], [], []>} : vector<2x64xbf16>, vector<64x64xbf16>, vector<2x64xf32> -> vector<2x64xf32>
    %c0_10 = arith.constant 0 : index
    %c0_11 = arith.constant 0 : index
    %13 = vector.load %arg8[%c0_10, %c0_11] : memref<1x64xf32, #tpu.memory_space<vmem>>, vector<1x64xf32>
    %14 = vector.broadcast %13 : vector<1x64xf32> to vector<2x64xf32>
    %15 = arith.addf %12, %14 : vector<2x64xf32>
    %16 = vector.extract_strided_slice %7 {offsets = [0, 0], sizes = [2, 132], strides = [1, 1]} : vector<2x264xf32> to vector<2x132xf32>
    %17 = vector.extract_strided_slice %7 {offsets = [0, 132], sizes = [2, 132], strides = [1, 1]} : vector<2x264xf32> to vector<2x132xf32>
    %cst_12 = arith.constant -1.000000e+01 : f32
    %cst_13 = arith.constant 1.000000e+01 : f32
    %18 = vector.broadcast %cst_12 : f32 to vector<2x132xf32>
    %19 = arith.maximumf %18, %17 : vector<2x132xf32>
    %20 = vector.broadcast %cst_13 : f32 to vector<2x132xf32>
    %21 = arith.minimumf %20, %19 : vector<2x132xf32>
    %22 = vector.extract_strided_slice %15 {offsets = [0, 0], sizes = [2, 32], strides = [1, 1]} : vector<2x64xf32> to vector<2x32xf32>
    %23 = vector.extract_strided_slice %15 {offsets = [0, 32], sizes = [2, 32], strides = [1, 1]} : vector<2x64xf32> to vector<2x32xf32>
    %cst_14 = arith.constant -1.000000e+01 : f32
    %cst_15 = arith.constant 1.000000e+01 : f32
    %24 = vector.broadcast %cst_14 : f32 to vector<2x32xf32>
    %25 = arith.maximumf %24, %23 : vector<2x32xf32>
    %26 = vector.broadcast %cst_15 : f32 to vector<2x32xf32>
    %27 = arith.minimumf %26, %25 : vector<2x32xf32>
    %c0_16 = arith.constant 0 : index
    %c0_17 = arith.constant 0 : index
    %28 = vector.load %arg1[%c0_16, %c0_17] : memref<2x132xf32, #tpu.memory_space<vmem>>, vector<2x132xf32>
    %29 = arith.subf %28, %16 : vector<2x132xf32>
    %cst_18 = arith.constant 0.000000e+00 : f32
    %30 = vector.broadcast %cst_18 : f32 to vector<2x132xf32>
    %31 = arith.subf %30, %21 : vector<2x132xf32>
    %32 = math.exp %31 : vector<2x132xf32>
    %33 = arith.mulf %29, %32 : vector<2x132xf32>
    %c0_19 = arith.constant 0 : index
    %c0_20 = arith.constant 0 : index
    %34 = vector.load %arg2[%c0_19, %c0_20] : memref<2x32xf32, #tpu.memory_space<vmem>>, vector<2x32xf32>
    %35 = arith.subf %34, %22 : vector<2x32xf32>
    %cst_21 = arith.constant 0.000000e+00 : f32
    %36 = vector.broadcast %cst_21 : f32 to vector<2x32xf32>
    %37 = arith.subf %36, %27 : vector<2x32xf32>
    %38 = math.exp %37 : vector<2x32xf32>
    %39 = arith.mulf %35, %38 : vector<2x32xf32>
    %40 = arith.mulf %33, %33 : vector<2x132xf32>
    %41 = vector.shape_cast %40 : vector<2x132xf32> to vector<1x2x132xf32>
    %cst_22 = arith.constant dense<0.000000e+00> : vector<1xf32>
    %42 = vector.multi_reduction <add>, %41, %cst_22 [1, 2] : vector<1x2x132xf32> to vector<1xf32>
    %43 = vector.shape_cast %42 : vector<1xf32> to vector<1x1x1xf32>
    %44 = vector.extract %43[0, 0, 0] : f32 from vector<1x1x1xf32>
    %cst_23 = arith.constant 5.000000e-01 : f32
    %45 = arith.mulf %cst_23, %44 : f32
    %46 = vector.shape_cast %21 : vector<2x132xf32> to vector<1x2x132xf32>
    %cst_24 = arith.constant dense<0.000000e+00> : vector<1xf32>
    %47 = vector.multi_reduction <add>, %46, %cst_24 [1, 2] : vector<1x2x132xf32> to vector<1xf32>
    %48 = vector.shape_cast %47 : vector<1xf32> to vector<1x1x1xf32>
    %49 = vector.extract %48[0, 0, 0] : f32 from vector<1x1x1xf32>
    %50 = arith.addf %45, %49 : f32
    %cst_25 = arith.constant 2.000000e+00 : f32
    %51 = arith.divf %50, %cst_25 : f32
    %cst_26 = arith.constant 121.299889 : f32
    %52 = arith.addf %51, %cst_26 : f32
    %53 = arith.mulf %39, %39 : vector<2x32xf32>
    %54 = vector.shape_cast %53 : vector<2x32xf32> to vector<1x2x32xf32>
    %cst_27 = arith.constant dense<0.000000e+00> : vector<1xf32>
    %55 = vector.multi_reduction <add>, %54, %cst_27 [1, 2] : vector<1x2x32xf32> to vector<1xf32>
    %56 = vector.shape_cast %55 : vector<1xf32> to vector<1x1x1xf32>
    %57 = vector.extract %56[0, 0, 0] : f32 from vector<1x1x1xf32>
    %cst_28 = arith.constant 5.000000e-01 : f32
    %58 = arith.mulf %cst_28, %57 : f32
    %59 = vector.shape_cast %27 : vector<2x32xf32> to vector<1x2x32xf32>
    %cst_29 = arith.constant dense<0.000000e+00> : vector<1xf32>
    %60 = vector.multi_reduction <add>, %59, %cst_29 [1, 2] : vector<1x2x32xf32> to vector<1xf32>
    %61 = vector.shape_cast %60 : vector<1xf32> to vector<1x1x1xf32>
    %62 = vector.extract %61[0, 0, 0] : f32 from vector<1x1x1xf32>
    %63 = arith.addf %58, %62 : f32
    %cst_30 = arith.constant 2.000000e+00 : f32
    %64 = arith.divf %63, %cst_30 : f32
    %cst_31 = arith.constant 29.4060326 : f32
    %65 = arith.addf %64, %cst_31 : f32
    %66 = tpu.iota {dimensions = array<i32: 0>} : vector<8x2xi32>
    %67 = tpu.iota {dimensions = array<i32: 1>} : vector<8x2xi32>
    %c4_i32 = arith.constant 4 : i32
    %68 = vector.broadcast %c4_i32 : i32 to vector<8x2xi32>
    %69 = arith.muli %67, %68 : vector<8x2xi32>
    %70 = arith.cmpi sge, %66, %69 : vector<8x2xi32>
    %c1_i32 = arith.constant 1 : i32
    %71 = vector.broadcast %c1_i32 : i32 to vector<8x2xi32>
    %72 = arith.addi %67, %71 : vector<8x2xi32>
    %c4_i32_32 = arith.constant 4 : i32
    %73 = vector.broadcast %c4_i32_32 : i32 to vector<8x2xi32>
    %74 = arith.muli %72, %73 : vector<8x2xi32>
    %75 = arith.cmpi slt, %66, %74 : vector<8x2xi32>
    %76 = arith.andi %70, %75 : vector<8x2xi1>
    %77 = arith.extui %76 : vector<8x2xi1> to vector<8x2xi32>
    %78 = arith.sitofp %77 : vector<8x2xi32> to vector<8x2xf32>
    %cst_33 = arith.constant dense<0.000000e+00> : vector<8x264xf32>
    %79 = tpu.matmul %78, %7, %cst_33 {dimension_numbers = #tpu.dot_dimension_numbers<[1], [0], [0], [1], [0, 0, 1, 1], [], []>} : vector<8x2xf32>, vector<2x264xf32>, vector<8x264xf32> -> vector<8x264xf32>
    %cst_34 = arith.constant dense<0.000000e+00> : vector<8x64xf32>
    %80 = tpu.matmul %78, %15, %cst_34 {dimension_numbers = #tpu.dot_dimension_numbers<[1], [0], [0], [1], [0, 0, 1, 1], [], []>} : vector<8x2xf32>, vector<2x64xf32>, vector<8x64xf32> -> vector<8x64xf32>
    %c0_35 = arith.constant 0 : index
    %c0_36 = arith.constant 0 : index
    %81 = vector.load %arg15[%c0_35, %c0_36] : memref<2x171xf32, #tpu.memory_space<vmem>>, vector<2x171xf32>
    %cst_37 = arith.constant dense<0.000000e+00> : vector<8x171xf32>
    %82 = tpu.matmul %78, %81, %cst_37 {dimension_numbers = #tpu.dot_dimension_numbers<[1], [0], [0], [1], [0, 0, 1, 1], [], []>} : vector<8x2xf32>, vector<2x171xf32>, vector<8x171xf32> -> vector<8x171xf32>
    %83 = vector.extract_strided_slice %79 {offsets = [0, 0], sizes = [8, 132], strides = [1, 1]} : vector<8x264xf32> to vector<8x132xf32>
    %84 = vector.extract_strided_slice %79 {offsets = [0, 132], sizes = [8, 132], strides = [1, 1]} : vector<8x264xf32> to vector<8x132xf32>
    %cst_38 = arith.constant -1.000000e+01 : f32
    %cst_39 = arith.constant 1.000000e+01 : f32
    %85 = vector.broadcast %cst_38 : f32 to vector<8x132xf32>
    %86 = arith.maximumf %85, %84 : vector<8x132xf32>
    %87 = vector.broadcast %cst_39 : f32 to vector<8x132xf32>
    %88 = arith.minimumf %87, %86 : vector<8x132xf32>
    %89 = vector.extract_strided_slice %80 {offsets = [0, 0], sizes = [8, 32], strides = [1, 1]} : vector<8x64xf32> to vector<8x32xf32>
    %90 = vector.extract_strided_slice %80 {offsets = [0, 32], sizes = [8, 32], strides = [1, 1]} : vector<8x64xf32> to vector<8x32xf32>
    %cst_40 = arith.constant -1.000000e+01 : f32
    %cst_41 = arith.constant 1.000000e+01 : f32
    %91 = vector.broadcast %cst_40 : f32 to vector<8x32xf32>
    %92 = arith.maximumf %91, %90 : vector<8x32xf32>
    %93 = vector.broadcast %cst_41 : f32 to vector<8x32xf32>
    %94 = arith.minimumf %93, %92 : vector<8x32xf32>
    %95 = math.exp %88 : vector<8x132xf32>
    %c0_42 = arith.constant 0 : index
    %c0_43 = arith.constant 0 : index
    %96 = vector.load %arg9[%c0_42, %c0_43] : memref<8x132xf32, #tpu.memory_space<vmem>>, vector<8x132xf32>
    %97 = arith.mulf %95, %96 : vector<8x132xf32>
    %98 = arith.addf %83, %97 : vector<8x132xf32>
    %99 = math.exp %94 : vector<8x32xf32>
    %c0_44 = arith.constant 0 : index
    %c0_45 = arith.constant 0 : index
    %100 = vector.load %arg10[%c0_44, %c0_45] : memref<8x32xf32, #tpu.memory_space<vmem>>, vector<8x32xf32>
    %101 = arith.mulf %99, %100 : vector<8x32xf32>
    %102 = arith.addf %89, %101 : vector<8x32xf32>
    %103 = vector.extract_strided_slice %82 {offsets = [0, 0], sizes = [8, 10], strides = [1, 1]} : vector<8x171xf32> to vector<8x10xf32>
    %104 = vector.extract_strided_slice %82 {offsets = [0, 10], sizes = [8, 1], strides = [1, 1]} : vector<8x171xf32> to vector<8x1xf32>
    %105 = vector.extract_strided_slice %82 {offsets = [0, 11], sizes = [8, 1], strides = [1, 1]} : vector<8x171xf32> to vector<8x1xf32>
    %106 = vector.extract_strided_slice %82 {offsets = [0, 12], sizes = [8, 1], strides = [1, 1]} : vector<8x171xf32> to vector<8x1xf32>
    %107 = vector.extract_strided_slice %82 {offsets = [0, 13], sizes = [8, 1], strides = [1, 1]} : vector<8x171xf32> to vector<8x1xf32>
    %108 = vector.extract_strided_slice %82 {offsets = [0, 14], sizes = [8, 1], strides = [1, 1]} : vector<8x171xf32> to vector<8x1xf32>
    %109 = vector.extract_strided_slice %82 {offsets = [0, 15], sizes = [8, 22], strides = [1, 1]} : vector<8x171xf32> to vector<8x22xf32>
    %110 = vector.extract_strided_slice %82 {offsets = [0, 37], sizes = [8, 22], strides = [1, 1]} : vector<8x171xf32> to vector<8x22xf32>
    %111 = vector.extract_strided_slice %82 {offsets = [0, 59], sizes = [8, 8], strides = [1, 1]} : vector<8x171xf32> to vector<8x8xf32>
    %112 = vector.extract_strided_slice %82 {offsets = [0, 67], sizes = [8, 8], strides = [1, 1]} : vector<8x171xf32> to vector<8x8xf32>
    %113 = vector.extract_strided_slice %82 {offsets = [0, 75], sizes = [8, 8], strides = [1, 1]} : vector<8x171xf32> to vector<8x8xf32>
    %114 = vector.extract_strided_slice %82 {offsets = [0, 83], sizes = [8, 8], strides = [1, 1]} : vector<8x171xf32> to vector<8x8xf32>
    %115 = vector.extract_strided_slice %82 {offsets = [0, 91], sizes = [8, 8], strides = [1, 1]} : vector<8x171xf32> to vector<8x8xf32>
    %116 = vector.extract_strided_slice %82 {offsets = [0, 99], sizes = [8, 8], strides = [1, 1]} : vector<8x171xf32> to vector<8x8xf32>
    %117 = vector.extract_strided_slice %82 {offsets = [0, 107], sizes = [8, 64], strides = [1, 1]} : vector<8x171xf32> to vector<8x64xf32>
    %118 = vector.extract_strided_slice %98 {offsets = [0, 0], sizes = [8, 22], strides = [1, 1]} : vector<8x132xf32> to vector<8x22xf32>
    %119 = vector.extract_strided_slice %98 {offsets = [0, 22], sizes = [8, 22], strides = [1, 1]} : vector<8x132xf32> to vector<8x22xf32>
    %120 = vector.extract_strided_slice %98 {offsets = [0, 44], sizes = [8, 22], strides = [1, 1]} : vector<8x132xf32> to vector<8x22xf32>
    %121 = vector.extract_strided_slice %98 {offsets = [0, 66], sizes = [8, 22], strides = [1, 1]} : vector<8x132xf32> to vector<8x22xf32>
    %122 = vector.extract_strided_slice %98 {offsets = [0, 88], sizes = [8, 22], strides = [1, 1]} : vector<8x132xf32> to vector<8x22xf32>
    %123 = vector.extract_strided_slice %98 {offsets = [0, 110], sizes = [8, 22], strides = [1, 1]} : vector<8x132xf32> to vector<8x22xf32>
    %124 = arith.mulf %118, %118 : vector<8x22xf32>
    %125 = arith.mulf %119, %119 : vector<8x22xf32>
    %126 = arith.addf %124, %125 : vector<8x22xf32>
    %127 = arith.mulf %120, %120 : vector<8x22xf32>
    %128 = arith.addf %126, %127 : vector<8x22xf32>
    %129 = arith.mulf %118, %121 : vector<8x22xf32>
    %130 = arith.mulf %119, %122 : vector<8x22xf32>
    %131 = arith.addf %129, %130 : vector<8x22xf32>
    %132 = arith.mulf %120, %123 : vector<8x22xf32>
    %133 = arith.addf %131, %132 : vector<8x22xf32>
    %134 = arith.mulf %121, %121 : vector<8x22xf32>
    %135 = arith.mulf %122, %122 : vector<8x22xf32>
    %136 = arith.addf %134, %135 : vector<8x22xf32>
    %137 = arith.mulf %123, %123 : vector<8x22xf32>
    %138 = arith.addf %136, %137 : vector<8x22xf32>
    %cst_46 = arith.constant 1.000000e+00 : f32
    %139 = vector.broadcast %cst_46 : f32 to vector<8x22xf32>
    %140 = arith.subf %128, %139 : vector<8x22xf32>
    %141 = arith.mulf %140, %140 : vector<8x22xf32>
    %cst_47 = arith.constant 2.000000e+00 : f32
    %142 = vector.broadcast %cst_47 : f32 to vector<8x22xf32>
    %143 = arith.mulf %142, %133 : vector<8x22xf32>
    %144 = arith.mulf %143, %133 : vector<8x22xf32>
    %145 = arith.addf %141, %144 : vector<8x22xf32>
    %cst_48 = arith.constant 1.000000e+00 : f32
    %146 = vector.broadcast %cst_48 : f32 to vector<8x22xf32>
    %147 = arith.subf %138, %146 : vector<8x22xf32>
    %148 = arith.mulf %147, %147 : vector<8x22xf32>
    %149 = arith.addf %145, %148 : vector<8x22xf32>
    %150 = vector.shape_cast %149 : vector<8x22xf32> to vector<1x8x22xf32>
    %cst_49 = arith.constant dense<0.000000e+00> : vector<1xf32>
    %151 = vector.multi_reduction <add>, %150, %cst_49 [1, 2] : vector<1x8x22xf32> to vector<1xf32>
    %152 = vector.shape_cast %151 : vector<1xf32> to vector<1x1x1xf32>
    %153 = vector.extract %152[0, 0, 0] : f32 from vector<1x1x1xf32>
    %cst_50 = arith.constant 7.040000e+02 : f32
    %154 = arith.divf %153, %cst_50 : f32
    %cst_51 = arith.constant 9.99999996E-13 : f32
    %155 = vector.broadcast %cst_51 : f32 to vector<8x22xf32>
    %156 = arith.addf %128, %155 : vector<8x22xf32>
    %157 = math.rsqrt %156 : vector<8x22xf32>
    %158 = arith.mulf %118, %157 : vector<8x22xf32>
    %159 = arith.mulf %119, %157 : vector<8x22xf32>
    %160 = arith.mulf %120, %157 : vector<8x22xf32>
    %161 = arith.mulf %158, %121 : vector<8x22xf32>
    %162 = arith.mulf %159, %122 : vector<8x22xf32>
    %163 = arith.addf %161, %162 : vector<8x22xf32>
    %164 = arith.mulf %160, %123 : vector<8x22xf32>
    %165 = arith.addf %163, %164 : vector<8x22xf32>
    %166 = arith.mulf %165, %158 : vector<8x22xf32>
    %167 = arith.subf %121, %166 : vector<8x22xf32>
    %168 = arith.mulf %165, %159 : vector<8x22xf32>
    %169 = arith.subf %122, %168 : vector<8x22xf32>
    %170 = arith.mulf %165, %160 : vector<8x22xf32>
    %171 = arith.subf %123, %170 : vector<8x22xf32>
    %172 = arith.mulf %167, %167 : vector<8x22xf32>
    %173 = arith.mulf %169, %169 : vector<8x22xf32>
    %174 = arith.addf %172, %173 : vector<8x22xf32>
    %175 = arith.mulf %171, %171 : vector<8x22xf32>
    %176 = arith.addf %174, %175 : vector<8x22xf32>
    %cst_52 = arith.constant 9.99999996E-13 : f32
    %177 = vector.broadcast %cst_52 : f32 to vector<8x22xf32>
    %178 = arith.addf %176, %177 : vector<8x22xf32>
    %179 = math.rsqrt %178 : vector<8x22xf32>
    %180 = arith.mulf %167, %179 : vector<8x22xf32>
    %181 = arith.mulf %169, %179 : vector<8x22xf32>
    %182 = arith.mulf %171, %179 : vector<8x22xf32>
    %183 = arith.mulf %159, %182 : vector<8x22xf32>
    %184 = arith.mulf %160, %181 : vector<8x22xf32>
    %185 = arith.subf %183, %184 : vector<8x22xf32>
    %186 = arith.mulf %160, %180 : vector<8x22xf32>
    %187 = arith.mulf %158, %182 : vector<8x22xf32>
    %188 = arith.subf %186, %187 : vector<8x22xf32>
    %189 = arith.mulf %158, %181 : vector<8x22xf32>
    %190 = arith.mulf %159, %180 : vector<8x22xf32>
    %191 = arith.subf %189, %190 : vector<8x22xf32>
    %192 = tpu.concatenate %158, %159, %160, %180, %181, %182, %185, %188, %191, %103 in 1 : vector<8x22xf32>, vector<8x22xf32>, vector<8x22xf32>, vector<8x22xf32>, vector<8x22xf32>, vector<8x22xf32>, vector<8x22xf32>, vector<8x22xf32>, vector<8x22xf32>, vector<8x10xf32> -> vector<8x208xf32>
    %c0_53 = arith.constant 0 : index
    %c0_54 = arith.constant 0 : index
    %193 = vector.load %arg11[%c0_53, %c0_54] : memref<208x66xf32, #tpu.memory_space<vmem>>, vector<208x66xf32>
    %cst_55 = arith.constant dense<0.000000e+00> : vector<8x66xf32>
    %194 = tpu.matmul %192, %193, %cst_55 {dimension_numbers = #tpu.dot_dimension_numbers<[1], [0], [0], [1], [0, 0, 1, 1], [], []>} : vector<8x208xf32>, vector<208x66xf32>, vector<8x66xf32> -> vector<8x66xf32>
    %195 = vector.extract_strided_slice %194 {offsets = [0, 0], sizes = [8, 22], strides = [1, 1]} : vector<8x66xf32> to vector<8x22xf32>
    %196 = vector.extract_strided_slice %194 {offsets = [0, 22], sizes = [8, 22], strides = [1, 1]} : vector<8x66xf32> to vector<8x22xf32>
    %197 = vector.extract_strided_slice %194 {offsets = [0, 44], sizes = [8, 22], strides = [1, 1]} : vector<8x66xf32> to vector<8x22xf32>
    %198 = vector.extract_strided_slice %195 {offsets = [0, 0], sizes = [8, 1], strides = [1, 1]} : vector<8x22xf32> to vector<8x1xf32>
    %199 = vector.broadcast %198 : vector<8x1xf32> to vector<8x22xf32>
    %200 = arith.subf %195, %199 : vector<8x22xf32>
    %201 = vector.extract_strided_slice %196 {offsets = [0, 0], sizes = [8, 1], strides = [1, 1]} : vector<8x22xf32> to vector<8x1xf32>
    %202 = vector.broadcast %201 : vector<8x1xf32> to vector<8x22xf32>
    %203 = arith.subf %196, %202 : vector<8x22xf32>
    %204 = vector.extract_strided_slice %197 {offsets = [0, 0], sizes = [8, 1], strides = [1, 1]} : vector<8x22xf32> to vector<8x1xf32>
    %205 = vector.broadcast %204 : vector<8x1xf32> to vector<8x22xf32>
    %206 = arith.subf %197, %205 : vector<8x22xf32>
    %207 = vector.broadcast %104 : vector<8x1xf32> to vector<8x22xf32>
    %208 = arith.addf %200, %207 : vector<8x22xf32>
    %209 = vector.broadcast %105 : vector<8x1xf32> to vector<8x22xf32>
    %210 = arith.addf %203, %209 : vector<8x22xf32>
    %211 = vector.broadcast %106 : vector<8x1xf32> to vector<8x22xf32>
    %212 = arith.addf %206, %211 : vector<8x22xf32>
    %213 = math.absf %212 : vector<8x22xf32>
    %cst_56 = arith.constant 9.99999997E-7 : f32
    %214 = vector.broadcast %cst_56 : f32 to vector<8x22xf32>
    %215 = arith.maximumf %213, %214 : vector<8x22xf32>
    %cst_57 = arith.constant 0.000000e+00 : f32
    %216 = vector.broadcast %cst_57 : f32 to vector<8x22xf32>
    %217 = arith.cmpf oge, %212, %216 : vector<8x22xf32>
    %cst_58 = arith.constant 0.000000e+00 : f32
    %218 = vector.broadcast %cst_58 : f32 to vector<8x22xf32>
    %219 = arith.subf %218, %215 : vector<8x22xf32>
    %220 = arith.select %217, %215, %219 : vector<8x22xi1>, vector<8x22xf32>
    %221 = tpu.reciprocal %220 {approx = true} : vector<8x22xf32> -> vector<8x22xf32>
    %222 = arith.mulf %208, %221 : vector<8x22xf32>
    %223 = vector.broadcast %107 : vector<8x1xf32> to vector<8x22xf32>
    %224 = arith.mulf %222, %223 : vector<8x22xf32>
    %225 = arith.mulf %210, %221 : vector<8x22xf32>
    %226 = vector.broadcast %108 : vector<8x1xf32> to vector<8x22xf32>
    %227 = arith.mulf %225, %226 : vector<8x22xf32>
    %228 = arith.subf %224, %109 : vector<8x22xf32>
    %229 = math.absf %228 : vector<8x22xf32>
    %230 = arith.subf %227, %110 : vector<8x22xf32>
    %231 = math.absf %230 : vector<8x22xf32>
    %232 = arith.addf %229, %231 : vector<8x22xf32>
    %233 = vector.shape_cast %232 : vector<8x22xf32> to vector<1x8x22xf32>
    %cst_59 = arith.constant dense<0.000000e+00> : vector<1xf32>
    %234 = vector.multi_reduction <add>, %233, %cst_59 [1, 2] : vector<1x8x22xf32> to vector<1xf32>
    %235 = vector.shape_cast %234 : vector<1xf32> to vector<1x1x1xf32>
    %236 = vector.extract %235[0, 0, 0] : f32 from vector<1x1x1xf32>
    %cst_60 = arith.constant 3.520000e+02 : f32
    %237 = arith.divf %236, %cst_60 : f32
    %c0_61 = arith.constant 0 : index
    %c0_62 = arith.constant 0 : index
    %238 = vector.load %arg12[%c0_61, %c0_62] : memref<32x64xf32, #tpu.memory_space<vmem>>, vector<32x64xf32>
    %cst_63 = arith.constant dense<0.000000e+00> : vector<8x64xf32>
    %239 = tpu.matmul %102, %238, %cst_63 {dimension_numbers = #tpu.dot_dimension_numbers<[1], [0], [0], [1], [0, 0, 1, 1], [], []>} : vector<8x32xf32>, vector<32x64xf32>, vector<8x64xf32> -> vector<8x64xf32>
    %240 = arith.addf %239, %117 : vector<8x64xf32>
    %c0_64 = arith.constant 0 : index
    %c0_65 = arith.constant 0 : index
    %241 = vector.load %arg13[%c0_64, %c0_65] : memref<64x6xf32, #tpu.memory_space<vmem>>, vector<64x6xf32>
    %cst_66 = arith.constant dense<0.000000e+00> : vector<8x6xf32>
    %242 = tpu.matmul %240, %241, %cst_66 {dimension_numbers = #tpu.dot_dimension_numbers<[1], [0], [0], [1], [0, 0, 1, 1], [], []>} : vector<8x64xf32>, vector<64x6xf32>, vector<8x6xf32> -> vector<8x6xf32>
    %c0_67 = arith.constant 0 : index
    %c0_68 = arith.constant 0 : index
    %243 = vector.load %arg14[%c0_67, %c0_68] : memref<64x3xf32, #tpu.memory_space<vmem>>, vector<64x3xf32>
    %cst_69 = arith.constant dense<0.000000e+00> : vector<8x3xf32>
    %244 = tpu.matmul %240, %243, %cst_69 {dimension_numbers = #tpu.dot_dimension_numbers<[1], [0], [0], [1], [0, 0, 1, 1], [], []>} : vector<8x64xf32>, vector<64x3xf32>, vector<8x3xf32> -> vector<8x3xf32>
    %245 = vector.extract_strided_slice %242 {offsets = [0, 0], sizes = [8, 1], strides = [1, 1]} : vector<8x6xf32> to vector<8x1xf32>
    %246 = vector.extract_strided_slice %242 {offsets = [0, 1], sizes = [8, 1], strides = [1, 1]} : vector<8x6xf32> to vector<8x1xf32>
    %247 = vector.extract_strided_slice %242 {offsets = [0, 2], sizes = [8, 1], strides = [1, 1]} : vector<8x6xf32> to vector<8x1xf32>
    %248 = vector.extract_strided_slice %242 {offsets = [0, 3], sizes = [8, 1], strides = [1, 1]} : vector<8x6xf32> to vector<8x1xf32>
    %249 = vector.extract_strided_slice %242 {offsets = [0, 4], sizes = [8, 1], strides = [1, 1]} : vector<8x6xf32> to vector<8x1xf32>
    %250 = vector.extract_strided_slice %242 {offsets = [0, 5], sizes = [8, 1], strides = [1, 1]} : vector<8x6xf32> to vector<8x1xf32>
    %251 = arith.mulf %245, %245 : vector<8x1xf32>
    %252 = arith.mulf %246, %246 : vector<8x1xf32>
    %253 = arith.addf %251, %252 : vector<8x1xf32>
    %254 = arith.mulf %247, %247 : vector<8x1xf32>
    %255 = arith.addf %253, %254 : vector<8x1xf32>
    %cst_70 = arith.constant 9.99999996E-13 : f32
    %256 = vector.broadcast %cst_70 : f32 to vector<8x1xf32>
    %257 = arith.addf %255, %256 : vector<8x1xf32>
    %258 = math.rsqrt %257 : vector<8x1xf32>
    %259 = arith.mulf %245, %258 : vector<8x1xf32>
    %260 = arith.mulf %246, %258 : vector<8x1xf32>
    %261 = arith.mulf %247, %258 : vector<8x1xf32>
    %262 = arith.mulf %259, %248 : vector<8x1xf32>
    %263 = arith.mulf %260, %249 : vector<8x1xf32>
    %264 = arith.addf %262, %263 : vector<8x1xf32>
    %265 = arith.mulf %261, %250 : vector<8x1xf32>
    %266 = arith.addf %264, %265 : vector<8x1xf32>
    %267 = arith.mulf %266, %259 : vector<8x1xf32>
    %268 = arith.subf %248, %267 : vector<8x1xf32>
    %269 = arith.mulf %266, %260 : vector<8x1xf32>
    %270 = arith.subf %249, %269 : vector<8x1xf32>
    %271 = arith.mulf %266, %261 : vector<8x1xf32>
    %272 = arith.subf %250, %271 : vector<8x1xf32>
    %273 = arith.mulf %268, %268 : vector<8x1xf32>
    %274 = arith.mulf %270, %270 : vector<8x1xf32>
    %275 = arith.addf %273, %274 : vector<8x1xf32>
    %276 = arith.mulf %272, %272 : vector<8x1xf32>
    %277 = arith.addf %275, %276 : vector<8x1xf32>
    %cst_71 = arith.constant 9.99999996E-13 : f32
    %278 = vector.broadcast %cst_71 : f32 to vector<8x1xf32>
    %279 = arith.addf %277, %278 : vector<8x1xf32>
    %280 = math.rsqrt %279 : vector<8x1xf32>
    %281 = arith.mulf %268, %280 : vector<8x1xf32>
    %282 = arith.mulf %270, %280 : vector<8x1xf32>
    %283 = arith.mulf %272, %280 : vector<8x1xf32>
    %284 = arith.mulf %260, %283 : vector<8x1xf32>
    %285 = arith.mulf %261, %282 : vector<8x1xf32>
    %286 = arith.subf %284, %285 : vector<8x1xf32>
    %287 = arith.mulf %261, %281 : vector<8x1xf32>
    %288 = arith.mulf %259, %283 : vector<8x1xf32>
    %289 = arith.subf %287, %288 : vector<8x1xf32>
    %290 = arith.mulf %259, %282 : vector<8x1xf32>
    %291 = arith.mulf %260, %281 : vector<8x1xf32>
    %292 = arith.subf %290, %291 : vector<8x1xf32>
    %293 = vector.extract_strided_slice %158 {offsets = [0, 0], sizes = [8, 1], strides = [1, 1]} : vector<8x22xf32> to vector<8x1xf32>
    %294 = vector.extract_strided_slice %159 {offsets = [0, 0], sizes = [8, 1], strides = [1, 1]} : vector<8x22xf32> to vector<8x1xf32>
    %295 = vector.extract_strided_slice %160 {offsets = [0, 0], sizes = [8, 1], strides = [1, 1]} : vector<8x22xf32> to vector<8x1xf32>
    %296 = vector.extract_strided_slice %180 {offsets = [0, 0], sizes = [8, 1], strides = [1, 1]} : vector<8x22xf32> to vector<8x1xf32>
    %297 = vector.extract_strided_slice %181 {offsets = [0, 0], sizes = [8, 1], strides = [1, 1]} : vector<8x22xf32> to vector<8x1xf32>
    %298 = vector.extract_strided_slice %182 {offsets = [0, 0], sizes = [8, 1], strides = [1, 1]} : vector<8x22xf32> to vector<8x1xf32>
    %299 = vector.extract_strided_slice %185 {offsets = [0, 0], sizes = [8, 1], strides = [1, 1]} : vector<8x22xf32> to vector<8x1xf32>
    %300 = vector.extract_strided_slice %188 {offsets = [0, 0], sizes = [8, 1], strides = [1, 1]} : vector<8x22xf32> to vector<8x1xf32>
    %301 = vector.extract_strided_slice %191 {offsets = [0, 0], sizes = [8, 1], strides = [1, 1]} : vector<8x22xf32> to vector<8x1xf32>
    %302 = arith.mulf %293, %259 : vector<8x1xf32>
    %303 = arith.mulf %294, %281 : vector<8x1xf32>
    %304 = arith.addf %302, %303 : vector<8x1xf32>
    %305 = arith.mulf %295, %286 : vector<8x1xf32>
    %306 = arith.addf %304, %305 : vector<8x1xf32>
    %307 = arith.mulf %293, %260 : vector<8x1xf32>
    %308 = arith.mulf %294, %282 : vector<8x1xf32>
    %309 = arith.addf %307, %308 : vector<8x1xf32>
    %310 = arith.mulf %295, %289 : vector<8x1xf32>
    %311 = arith.addf %309, %310 : vector<8x1xf32>
    %312 = arith.mulf %293, %261 : vector<8x1xf32>
    %313 = arith.mulf %294, %283 : vector<8x1xf32>
    %314 = arith.addf %312, %313 : vector<8x1xf32>
    %315 = arith.mulf %295, %292 : vector<8x1xf32>
    %316 = arith.addf %314, %315 : vector<8x1xf32>
    %317 = arith.mulf %296, %259 : vector<8x1xf32>
    %318 = arith.mulf %297, %281 : vector<8x1xf32>
    %319 = arith.addf %317, %318 : vector<8x1xf32>
    %320 = arith.mulf %298, %286 : vector<8x1xf32>
    %321 = arith.addf %319, %320 : vector<8x1xf32>
    %322 = arith.mulf %296, %260 : vector<8x1xf32>
    %323 = arith.mulf %297, %282 : vector<8x1xf32>
    %324 = arith.addf %322, %323 : vector<8x1xf32>
    %325 = arith.mulf %298, %289 : vector<8x1xf32>
    %326 = arith.addf %324, %325 : vector<8x1xf32>
    %327 = arith.mulf %296, %261 : vector<8x1xf32>
    %328 = arith.mulf %297, %283 : vector<8x1xf32>
    %329 = arith.addf %327, %328 : vector<8x1xf32>
    %330 = arith.mulf %298, %292 : vector<8x1xf32>
    %331 = arith.addf %329, %330 : vector<8x1xf32>
    %332 = arith.mulf %299, %259 : vector<8x1xf32>
    %333 = arith.mulf %300, %281 : vector<8x1xf32>
    %334 = arith.addf %332, %333 : vector<8x1xf32>
    %335 = arith.mulf %301, %286 : vector<8x1xf32>
    %336 = arith.addf %334, %335 : vector<8x1xf32>
    %337 = arith.mulf %299, %260 : vector<8x1xf32>
    %338 = arith.mulf %300, %282 : vector<8x1xf32>
    %339 = arith.addf %337, %338 : vector<8x1xf32>
    %340 = arith.mulf %301, %289 : vector<8x1xf32>
    %341 = arith.addf %339, %340 : vector<8x1xf32>
    %342 = arith.mulf %299, %261 : vector<8x1xf32>
    %343 = arith.mulf %300, %283 : vector<8x1xf32>
    %344 = arith.addf %342, %343 : vector<8x1xf32>
    %345 = arith.mulf %301, %292 : vector<8x1xf32>
    %346 = arith.addf %344, %345 : vector<8x1xf32>
    %347 = vector.extract_strided_slice %244 {offsets = [0, 0], sizes = [8, 1], strides = [1, 1]} : vector<8x3xf32> to vector<8x1xf32>
    %348 = vector.extract_strided_slice %244 {offsets = [0, 1], sizes = [8, 1], strides = [1, 1]} : vector<8x3xf32> to vector<8x1xf32>
    %349 = vector.extract_strided_slice %244 {offsets = [0, 2], sizes = [8, 1], strides = [1, 1]} : vector<8x3xf32> to vector<8x1xf32>
    %350 = arith.mulf %293, %347 : vector<8x1xf32>
    %351 = arith.mulf %294, %348 : vector<8x1xf32>
    %352 = arith.addf %350, %351 : vector<8x1xf32>
    %353 = arith.mulf %295, %349 : vector<8x1xf32>
    %354 = arith.addf %352, %353 : vector<8x1xf32>
    %355 = arith.addf %354, %104 : vector<8x1xf32>
    %356 = arith.mulf %296, %347 : vector<8x1xf32>
    %357 = arith.mulf %297, %348 : vector<8x1xf32>
    %358 = arith.addf %356, %357 : vector<8x1xf32>
    %359 = arith.mulf %298, %349 : vector<8x1xf32>
    %360 = arith.addf %358, %359 : vector<8x1xf32>
    %361 = arith.addf %360, %105 : vector<8x1xf32>
    %362 = arith.mulf %299, %347 : vector<8x1xf32>
    %363 = arith.mulf %300, %348 : vector<8x1xf32>
    %364 = arith.addf %362, %363 : vector<8x1xf32>
    %365 = arith.mulf %301, %349 : vector<8x1xf32>
    %366 = arith.addf %364, %365 : vector<8x1xf32>
    %367 = arith.addf %366, %106 : vector<8x1xf32>
    %368 = vector.broadcast %306 : vector<8x1xf32> to vector<8x8xf32>
    %369 = arith.mulf %368, %111 : vector<8x8xf32>
    %370 = vector.broadcast %311 : vector<8x1xf32> to vector<8x8xf32>
    %371 = arith.mulf %370, %112 : vector<8x8xf32>
    %372 = arith.addf %369, %371 : vector<8x8xf32>
    %373 = vector.broadcast %316 : vector<8x1xf32> to vector<8x8xf32>
    %374 = arith.mulf %373, %113 : vector<8x8xf32>
    %375 = arith.addf %372, %374 : vector<8x8xf32>
    %376 = vector.broadcast %355 : vector<8x1xf32> to vector<8x8xf32>
    %377 = arith.addf %375, %376 : vector<8x8xf32>
    %378 = vector.broadcast %321 : vector<8x1xf32> to vector<8x8xf32>
    %379 = arith.mulf %378, %111 : vector<8x8xf32>
    %380 = vector.broadcast %326 : vector<8x1xf32> to vector<8x8xf32>
    %381 = arith.mulf %380, %112 : vector<8x8xf32>
    %382 = arith.addf %379, %381 : vector<8x8xf32>
    %383 = vector.broadcast %331 : vector<8x1xf32> to vector<8x8xf32>
    %384 = arith.mulf %383, %113 : vector<8x8xf32>
    %385 = arith.addf %382, %384 : vector<8x8xf32>
    %386 = vector.broadcast %361 : vector<8x1xf32> to vector<8x8xf32>
    %387 = arith.addf %385, %386 : vector<8x8xf32>
    %388 = vector.broadcast %336 : vector<8x1xf32> to vector<8x8xf32>
    %389 = arith.mulf %388, %111 : vector<8x8xf32>
    %390 = vector.broadcast %341 : vector<8x1xf32> to vector<8x8xf32>
    %391 = arith.mulf %390, %112 : vector<8x8xf32>
    %392 = arith.addf %389, %391 : vector<8x8xf32>
    %393 = vector.broadcast %346 : vector<8x1xf32> to vector<8x8xf32>
    %394 = arith.mulf %393, %113 : vector<8x8xf32>
    %395 = arith.addf %392, %394 : vector<8x8xf32>
    %396 = vector.broadcast %367 : vector<8x1xf32> to vector<8x8xf32>
    %397 = arith.addf %395, %396 : vector<8x8xf32>
    %398 = math.absf %397 : vector<8x8xf32>
    %cst_72 = arith.constant 9.99999997E-7 : f32
    %399 = vector.broadcast %cst_72 : f32 to vector<8x8xf32>
    %400 = arith.maximumf %398, %399 : vector<8x8xf32>
    %cst_73 = arith.constant 0.000000e+00 : f32
    %401 = vector.broadcast %cst_73 : f32 to vector<8x8xf32>
    %402 = arith.cmpf oge, %397, %401 : vector<8x8xf32>
    %cst_74 = arith.constant 0.000000e+00 : f32
    %403 = vector.broadcast %cst_74 : f32 to vector<8x8xf32>
    %404 = arith.subf %403, %400 : vector<8x8xf32>
    %405 = arith.select %402, %400, %404 : vector<8x8xi1>, vector<8x8xf32>
    %406 = tpu.reciprocal %405 {approx = true} : vector<8x8xf32> -> vector<8x8xf32>
    %407 = arith.mulf %377, %406 : vector<8x8xf32>
    %408 = vector.broadcast %107 : vector<8x1xf32> to vector<8x8xf32>
    %409 = arith.mulf %407, %408 : vector<8x8xf32>
    %410 = arith.mulf %387, %406 : vector<8x8xf32>
    %411 = vector.broadcast %108 : vector<8x1xf32> to vector<8x8xf32>
    %412 = arith.mulf %410, %411 : vector<8x8xf32>
    %413 = arith.subf %409, %114 : vector<8x8xf32>
    %414 = math.absf %413 : vector<8x8xf32>
    %415 = arith.subf %412, %115 : vector<8x8xf32>
    %416 = math.absf %415 : vector<8x8xf32>
    %417 = arith.addf %414, %416 : vector<8x8xf32>
    %418 = arith.mulf %116, %417 : vector<8x8xf32>
    %419 = vector.shape_cast %418 : vector<8x8xf32> to vector<1x8x8xf32>
    %cst_75 = arith.constant dense<0.000000e+00> : vector<1xf32>
    %420 = vector.multi_reduction <add>, %419, %cst_75 [1, 2] : vector<1x8x8xf32> to vector<1xf32>
    %421 = vector.shape_cast %420 : vector<1xf32> to vector<1x1x1xf32>
    %422 = vector.extract %421[0, 0, 0] : f32 from vector<1x1x1xf32>
    %423 = vector.shape_cast %116 : vector<8x8xf32> to vector<1x8x8xf32>
    %cst_76 = arith.constant dense<0.000000e+00> : vector<1xf32>
    %424 = vector.multi_reduction <add>, %423, %cst_76 [1, 2] : vector<1x8x8xf32> to vector<1xf32>
    %425 = vector.shape_cast %424 : vector<1xf32> to vector<1x1x1xf32>
    %426 = vector.extract %425[0, 0, 0] : f32 from vector<1x1x1xf32>
    %cst_77 = arith.constant 2.000000e+00 : f32
    %427 = arith.mulf %cst_77, %426 : f32
    %cst_78 = arith.constant 9.99999971E-10 : f32
    %428 = arith.addf %427, %cst_78 : f32
    %429 = arith.divf %422, %428 : f32
    %430 = tpu.iota {dimensions = array<i32: 1>} : vector<1x128xi32>
    %c0_i32 = arith.constant 0 : i32
    %431 = vector.broadcast %c0_i32 : i32 to vector<1x128xi32>
    %432 = arith.cmpi eq, %430, %431 : vector<1x128xi32>
    %cst_79 = arith.constant 0.000000e+00 : f32
    %433 = vector.broadcast %52 : f32 to vector<1x128xf32>
    %434 = vector.broadcast %cst_79 : f32 to vector<1x128xf32>
    %435 = arith.select %432, %433, %434 : vector<1x128xi1>, vector<1x128xf32>
    %c1_i32_80 = arith.constant 1 : i32
    %436 = vector.broadcast %c1_i32_80 : i32 to vector<1x128xi32>
    %437 = arith.cmpi eq, %430, %436 : vector<1x128xi32>
    %cst_81 = arith.constant 0.000000e+00 : f32
    %438 = vector.broadcast %65 : f32 to vector<1x128xf32>
    %439 = vector.broadcast %cst_81 : f32 to vector<1x128xf32>
    %440 = arith.select %437, %438, %439 : vector<1x128xi1>, vector<1x128xf32>
    %441 = arith.addf %435, %440 : vector<1x128xf32>
    %c2_i32 = arith.constant 2 : i32
    %442 = vector.broadcast %c2_i32 : i32 to vector<1x128xi32>
    %443 = arith.cmpi eq, %430, %442 : vector<1x128xi32>
    %cst_82 = arith.constant 0.000000e+00 : f32
    %444 = vector.broadcast %237 : f32 to vector<1x128xf32>
    %445 = vector.broadcast %cst_82 : f32 to vector<1x128xf32>
    %446 = arith.select %443, %444, %445 : vector<1x128xi1>, vector<1x128xf32>
    %447 = arith.addf %441, %446 : vector<1x128xf32>
    %c3_i32 = arith.constant 3 : i32
    %448 = vector.broadcast %c3_i32 : i32 to vector<1x128xi32>
    %449 = arith.cmpi eq, %430, %448 : vector<1x128xi32>
    %cst_83 = arith.constant 0.000000e+00 : f32
    %450 = vector.broadcast %154 : f32 to vector<1x128xf32>
    %451 = vector.broadcast %cst_83 : f32 to vector<1x128xf32>
    %452 = arith.select %449, %450, %451 : vector<1x128xi1>, vector<1x128xf32>
    %453 = arith.addf %447, %452 : vector<1x128xf32>
    %c4_i32_84 = arith.constant 4 : i32
    %454 = vector.broadcast %c4_i32_84 : i32 to vector<1x128xi32>
    %455 = arith.cmpi eq, %430, %454 : vector<1x128xi32>
    %cst_85 = arith.constant 0.000000e+00 : f32
    %456 = vector.broadcast %429 : f32 to vector<1x128xf32>
    %457 = vector.broadcast %cst_85 : f32 to vector<1x128xf32>
    %458 = arith.select %455, %456, %457 : vector<1x128xi1>, vector<1x128xf32>
    %459 = arith.addf %453, %458 : vector<1x128xf32>
    %c0_86 = arith.constant 0 : index
    %c0_87 = arith.constant 0 : index
    %460 = vector.load %arg16[%c0_86, %c0_87] : memref<1x128xf32, #tpu.memory_space<vmem>>, vector<1x128xf32>
    tpu.vector_store %arg16[%c0_86, %c0_87], %459 {strides = array<i32>} : memref<1x128xf32, #tpu.memory_space<vmem>>, vector<1x128xf32>,
    return
  }
  func.func @transform_0(%arg0: i32) -> (i32, i32) {
    %c0_i32 = arith.constant 0 : i32
    %c0_i32_0 = arith.constant 0 : i32
    %c0_i32_1 = arith.constant 0 : i32
    return %c0_i32, %c0_i32_0 : i32, i32
  }
  func.func @transform_1(%arg0: i32) -> (i32, i32) {
    %c0_i32 = arith.constant 0 : i32
    %c0_i32_0 = arith.constant 0 : i32
    %c0_i32_1 = arith.constant 0 : i32
    return %c0_i32, %c0_i32_0 : i32, i32
  }
  func.func @transform_2(%arg0: i32) -> (i32, i32) {
    %c0_i32 = arith.constant 0 : i32
    %c0_i32_0 = arith.constant 0 : i32
    %c0_i32_1 = arith.constant 0 : i32
    return %c0_i32, %c0_i32_0 : i32, i32
  }
  func.func @transform_3(%arg0: i32) -> (i32, i32) {
    %c0_i32 = arith.constant 0 : i32
    %c0_i32_0 = arith.constant 0 : i32
    %c0_i32_1 = arith.constant 0 : i32
    return %c0_i32, %c0_i32_0 : i32, i32
  }
  func.func @transform_4(%arg0: i32) -> (i32, i32) {
    %c0_i32 = arith.constant 0 : i32
    %c0_i32_0 = arith.constant 0 : i32
    %c0_i32_1 = arith.constant 0 : i32
    return %c0_i32, %c0_i32_0 : i32, i32
  }
  func.func @transform_5(%arg0: i32) -> (i32, i32) {
    %c0_i32 = arith.constant 0 : i32
    %c0_i32_0 = arith.constant 0 : i32
    %c0_i32_1 = arith.constant 0 : i32
    return %c0_i32, %c0_i32_0 : i32, i32
  }
  func.func @transform_6(%arg0: i32) -> (i32, i32) {
    %c0_i32 = arith.constant 0 : i32
    %c0_i32_0 = arith.constant 0 : i32
    %c0_i32_1 = arith.constant 0 : i32
    return %c0_i32, %c0_i32_0 : i32, i32
  }
  func.func @transform_7(%arg0: i32) -> (i32, i32) {
    %c0_i32 = arith.constant 0 : i32
    %c0_i32_0 = arith.constant 0 : i32
    %c0_i32_1 = arith.constant 0 : i32
    return %c0_i32, %c0_i32_0 : i32, i32
  }
  func.func @transform_8(%arg0: i32) -> (i32, i32) {
    %c0_i32 = arith.constant 0 : i32
    %c0_i32_0 = arith.constant 0 : i32
    %c0_i32_1 = arith.constant 0 : i32
    return %c0_i32, %c0_i32_0 : i32, i32
  }
  func.func @transform_9(%arg0: i32) -> (i32, i32) {
    %c0_i32 = arith.constant 0 : i32
    %c0_i32_0 = arith.constant 0 : i32
    %c0_i32_1 = arith.constant 0 : i32
    return %c0_i32, %c0_i32_0 : i32, i32
  }
  func.func @transform_10(%arg0: i32) -> (i32, i32) {
    %c0_i32 = arith.constant 0 : i32
    %c0_i32_0 = arith.constant 0 : i32
    %c0_i32_1 = arith.constant 0 : i32
    return %c0_i32, %c0_i32_0 : i32, i32
  }
  func.func @transform_11(%arg0: i32) -> (i32, i32) {
    %c0_i32 = arith.constant 0 : i32
    %c0_i32_0 = arith.constant 0 : i32
    %c0_i32_1 = arith.constant 0 : i32
    return %c0_i32, %c0_i32_0 : i32, i32
  }
  func.func @transform_12(%arg0: i32) -> (i32, i32) {
    %c0_i32 = arith.constant 0 : i32
    %c0_i32_0 = arith.constant 0 : i32
    %c0_i32_1 = arith.constant 0 : i32
    return %c0_i32, %c0_i32_0 : i32, i32
  }
  func.func @transform_13(%arg0: i32) -> (i32, i32) {
    %c0_i32 = arith.constant 0 : i32
    %c0_i32_0 = arith.constant 0 : i32
    %c0_i32_1 = arith.constant 0 : i32
    return %c0_i32, %c0_i32_0 : i32, i32
  }
  func.func @transform_14(%arg0: i32) -> (i32, i32) {
    %c0_i32 = arith.constant 0 : i32
    %c0_i32_0 = arith.constant 0 : i32
    %c0_i32_1 = arith.constant 0 : i32
    return %c0_i32, %c0_i32_0 : i32, i32
  }
  func.func @transform_15(%arg0: i32) -> (i32, i32) {
    %c0_i32 = arith.constant 0 : i32
    %c0_i32_0 = arith.constant 0 : i32
    %c0_i32_1 = arith.constant 0 : i32
    return %c0_i32, %c0_i32_0 : i32, i32
  }
}

</mosaic_0001>

<llo_original>
// kernel: tpu_custom_call.1
$region0: #{tpu_custom_call.1}
  #allocation0 [shape = 'u32[]', space=smem, size = 0x4, offset = 0x4, fixed_abs, tag = 'smem constant byte address 0x4 - core index']
  #allocation1 [shape = 'u32[144,128]{1,0:T(1,128)}', space=vmem, size = 0x12000, scoped, tag = 'internal scratch']
  %s0 = inlined_call_operand.vmem [shape: f32[2,132], index: 0, kind: input, shape index: {}]
  %s1 = inlined_call_operand.vmem [shape: f32[2,32], index: 1, kind: input, shape index: {}]
  %s2 = inlined_call_operand.vmem [shape: f32[2,64], index: 2, kind: input, shape index: {}]
  %s3 = inlined_call_operand.vmem [shape: f32[2,64], index: 3, kind: input, shape index: {}]
  %s4 = inlined_call_operand.vmem [shape: f32[64,264], index: 4, kind: input, shape index: {}]
  %s5 = inlined_call_operand.vmem [shape: f32[1,264], index: 5, kind: input, shape index: {}]
  %s6 = inlined_call_operand.vmem [shape: f32[64,64], index: 6, kind: input, shape index: {}]
  %s7 = inlined_call_operand.vmem [shape: f32[1,64], index: 7, kind: input, shape index: {}]
  %s8 = inlined_call_operand.vmem [shape: f32[8,132], index: 8, kind: input, shape index: {}]
  %s9 = inlined_call_operand.vmem [shape: f32[8,32], index: 9, kind: input, shape index: {}]
  %s10 = inlined_call_operand.vmem [shape: f32[208,66], index: 10, kind: input, shape index: {}]
  %s11 = inlined_call_operand.vmem [shape: f32[32,64], index: 11, kind: input, shape index: {}]
  %s12 = inlined_call_operand.vmem [shape: f32[64,6], index: 12, kind: input, shape index: {}]
  %s13 = inlined_call_operand.vmem [shape: f32[64,3], index: 13, kind: input, shape index: {}]
  %s14 = inlined_call_operand.vmem [shape: f32[2,171], index: 14, kind: input, shape index: {}]
  %s15 = inlined_call_operand.hbm [shape: f32[1,128], index: 15, kind: output, shape index: {}]
  %s16 = sld [smem:[#allocation0]]
  $region70: #{tpu_custom_call.1} parent=0
    _
  %s18 = ssub.s32 1, %s16
  %s19 = scalar_select 0, %s18, %s16
  $region1: #{tpu_custom_call.1} parent=0
    #allocation2 [shape = 'u8[512]{0}', space=vmem, size = 0x400, scoped, tag = 'output window, operand 0, single buffered']
    #allocation3 [shape = 's32[1]{0}', space=sflag, size = 0x4, scoped, tag = 'scoped memory for tpu_custom_call.1']
    %20 = vsyncpa [#allocation3], 0
    // Predicated region
    $region2: #{tpu_custom_call.1} parent=1 // pred_check
      _
    $region3: #{tpu_custom_call.1} parent=1 // pred_check_branch
      %22 = sbr.rel (0) target = $region5
    $region4: #{tpu_custom_call.1} parent=1 // pred_region
      _
    $region5: #{tpu_custom_call.1} parent=1 // pred_fallthru
      _
    // Predicated region
    $region6: #{tpu_custom_call.1} parent=1 // pred_check
      _
    $region7: #{tpu_custom_call.1} parent=1 // pred_check_branch
      %24 = sbr.rel (0) target = $region9
    $region8: #{tpu_custom_call.1} parent=1 // pred_region
      _
    $region9: #{tpu_custom_call.1} parent=1 // pred_fallthru
      _
    // Predicated region
    $region10: #{tpu_custom_call.1} parent=1 // pred_check
      _
    $region11: #{tpu_custom_call.1} parent=1 // pred_check_branch
      %26 = sbr.rel (0) target = $region13
    $region12: #{tpu_custom_call.1} parent=1 // pred_region
      _
    $region13: #{tpu_custom_call.1} parent=1 // pred_fallthru
      _
    // Predicated region
    $region14: #{tpu_custom_call.1} parent=1 // pred_check
      _
    $region15: #{tpu_custom_call.1} parent=1 // pred_check_branch
      %28 = sbr.rel (0) target = $region17
    $region16: #{tpu_custom_call.1} parent=1 // pred_region
      _
    $region17: #{tpu_custom_call.1} parent=1 // pred_fallthru
      _
    // Predicated region
    $region18: #{tpu_custom_call.1} parent=1 // pred_check
      _
    $region19: #{tpu_custom_call.1} parent=1 // pred_check_branch
      %30 = sbr.rel (0) target = $region21
    $region20: #{tpu_custom_call.1} parent=1 // pred_region
      _
    $region21: #{tpu_custom_call.1} parent=1 // pred_fallthru
      _
    // Predicated region
    $region22: #{tpu_custom_call.1} parent=1 // pred_check
      _
    $region23: #{tpu_custom_call.1} parent=1 // pred_check_branch
      %32 = sbr.rel (0) target = $region25
    $region24: #{tpu_custom_call.1} parent=1 // pred_region
      _
    $region25: #{tpu_custom_call.1} parent=1 // pred_fallthru
      _
    // Predicated region
    $region26: #{tpu_custom_call.1} parent=1 // pred_check
      _
    $region27: #{tpu_custom_call.1} parent=1 // pred_check_branch
      %34 = sbr.rel (0) target = $region29
    $region28: #{tpu_custom_call.1} parent=1 // pred_region
      _
    $region29: #{tpu_custom_call.1} parent=1 // pred_fallthru
      _
    // Predicated region
    $region30: #{tpu_custom_call.1} parent=1 // pred_check
      _
    $region31: #{tpu_custom_call.1} parent=1 // pred_check_branch
      %36 = sbr.rel (0) target = $region33
    $region32: #{tpu_custom_call.1} parent=1 // pred_region
      _
    $region33: #{tpu_custom_call.1} parent=1 // pred_fallthru
      _
    // Predicated region
    $region34: #{tpu_custom_call.1} parent=1 // pred_check
      _
    $region35: #{tpu_custom_call.1} parent=1 // pred_check_branch
      %38 = sbr.rel (0) target = $region37
    $region36: #{tpu_custom_call.1} parent=1 // pred_region
      _
    $region37: #{tpu_custom_call.1} parent=1 // pred_fallthru
      _
    // Predicated region
    $region38: #{tpu_custom_call.1} parent=1 // pred_check
      _
    $region39: #{tpu_custom_call.1} parent=1 // pred_check_branch
      %40 = sbr.rel (0) target = $region41
    $region40: #{tpu_custom_call.1} parent=1 // pred_region
      _
    $region41: #{tpu_custom_call.1} parent=1 // pred_fallthru
      _
    // Predicated region
    $region42: #{tpu_custom_call.1} parent=1 // pred_check
      _
    $region43: #{tpu_custom_call.1} parent=1 // pred_check_branch
      %42 = sbr.rel (0) target = $region45
    $region44: #{tpu_custom_call.1} parent=1 // pred_region
      _
    $region45: #{tpu_custom_call.1} parent=1 // pred_fallthru
      _
    // Predicated region
    $region46: #{tpu_custom_call.1} parent=1 // pred_check
      _
    $region47: #{tpu_custom_call.1} parent=1 // pred_check_branch
      %44 = sbr.rel (0) target = $region49
    $region48: #{tpu_custom_call.1} parent=1 // pred_region
      _
    $region49: #{tpu_custom_call.1} parent=1 // pred_fallthru
      _
    // Predicated region
    $region50: #{tpu_custom_call.1} parent=1 // pred_check
      _
    $region51: #{tpu_custom_call.1} parent=1 // pred_check_branch
      %46 = sbr.rel (0) target = $region53
    $region52: #{tpu_custom_call.1} parent=1 // pred_region
      _
    $region53: #{tpu_custom_call.1} parent=1 // pred_fallthru
      _
    // Predicated region
    $region54: #{tpu_custom_call.1} parent=1 // pred_check
      _
    $region55: #{tpu_custom_call.1} parent=1 // pred_check_branch
      %48 = sbr.rel (0) target = $region57
    $region56: #{tpu_custom_call.1} parent=1 // pred_region
      _
    $region57: #{tpu_custom_call.1} parent=1 // pred_fallthru
      _
    // Predicated region
    $region58: #{tpu_custom_call.1} parent=1 // pred_check
      _
    $region59: #{tpu_custom_call.1} parent=1 // pred_check_branch
      %50 = sbr.rel (0) target = $region61
    $region60: #{tpu_custom_call.1} parent=1 // pred_region
      _
    $region61: #{tpu_custom_call.1} parent=1 // pred_fallthru
      _
    %v52 = vld [vmem:[%s2] sm:$0x3]
    %v53 = vpack.c.bf16 %v52, %v52
    %v54 = vld [vmem:[%s4] sm:$0xff]
    %v55 = vld [vmem:[%s4 + $0x8] sm:$0xff]
    %v56 = vld [vmem:[%s4 + $0x10] sm:$0xff]
    %v57 = vld [vmem:[%s4 + $0x18] sm:$0xff]
    %v58 = vld [vmem:[%s4 + $0x20] sm:$0xff]
    %v59 = vld [vmem:[%s4 + $0x28] sm:$0xff]
    %v60 = vld [vmem:[%s4 + $0x30] sm:$0xff]
    %v61 = vld [vmem:[%s4 + $0x38] sm:$0xff]
    %v62 = vld [vmem:[%s4 + $0x40] sm:$0xff]
    %v63 = vld [vmem:[%s4 + $0x48] sm:$0xff]
    %v64 = vld [vmem:[%s4 + $0x50] sm:$0xff]
    %v65 = vld [vmem:[%s4 + $0x58] sm:$0xff]
    %v66 = vld [vmem:[%s4 + $0x60] sm:$0xff]
    %v67 = vld [vmem:[%s4 + $0x68] sm:$0xff]
    %v68 = vld [vmem:[%s4 + $0x70] sm:$0xff]
    %v69 = vld [vmem:[%s4 + $0x78] sm:$0xff]
    %v70 = vld [vmem:[%s4 + $0x80] sm:$0xff]
    %v71 = vld [vmem:[%s4 + $0x88] sm:$0xff]
    %v72 = vld [vmem:[%s4 + $0x90] sm:$0xff]
    %v73 = vld [vmem:[%s4 + $0x98] sm:$0xff]
    %v74 = vld [vmem:[%s4 + $0xa0] sm:$0xff]
    %v75 = vld [vmem:[%s4 + $0xa8] sm:$0xff]
    %v76 = vld [vmem:[%s4 + $0xb0] sm:$0xff]
    %v77 = vld [vmem:[%s4 + $0xb8] sm:$0xff]
    %v78 = vpack.c.bf16 %v57, %v54
    %v79 = vpack.c.bf16 %v58, %v55
    %v80 = vpack.c.bf16 %v59, %v56
    %v81 = vpack.c.bf16 %v63, %v60
    %v82 = vpack.c.bf16 %v64, %v61
    %v83 = vpack.c.bf16 %v65, %v62
    %v84 = vpack.c.bf16 %v69, %v66
    %v85 = vpack.c.bf16 %v70, %v67
    %v86 = vpack.c.bf16 %v71, %v68
    %v87 = vpack.c.bf16 %v75, %v72
    %v88 = vpack.c.bf16 %v76, %v73
    %v89 = vpack.c.bf16 %v77, %v74
    %v90 = vld [vmem:[%s5] sm:$0x7]
    %v92 = vlaneseq
    %v93 = vshrl.u32 %v92, 7
    %v94 = vsub.s32 0, %v93
    %v95 = vrot.slane %v90, %v94
    %v96 = vlaneseq
    %v97 = vshrl.u32 %v96, 7
    %v98 = vsub.s32 1, %v97
    %v99 = vrot.slane %v90, %v98
    %v100 = vlaneseq
    %v101 = vshrl.u32 %v100, 7
    %v102 = vsub.s32 2, %v101
    %v103 = vrot.slane %v90, %v102
    %vm107 = vcmask 523264
    %v109 = vsel %vm107, %v53, 0
    %111 = vmatprep.subr.bf16.mxu0 %v79
    %112 = vmatpush1.bf16.msra.mxu0 %v78
    %113 = vmatprep.subr.bf16.mxu0 %v82
    %114 = vmatpush1.bf16.msra.mxu0 %v81
    %115 = vmatprep.subr.bf16.mxu0 %v85
    %116 = vmatpush1.bf16.msra.mxu0 %v84
    %117 = vmatprep.subr.bf16.mxu0 %v88
    %118 = vmatpush1.bf16.msra.mxu0 %v87
    %119 = vmatprep.subr.bf16.mxu0 0
    %120 = vmatpush1.bf16.msra.mxu0 0
    %121 = vmatprep.subr.bf16.mxu0 0
    %122 = vmatpush1.bf16.msra.mxu0 0
    %123 = vmatprep.subr.bf16.mxu0 0
    %124 = vmatpush1.bf16.msra.mxu0 0
    %125 = vmatprep.subr.bf16.mxu0 0
    %126 = vmatpush1.bf16.msra.mxu0 0
    %127 = vmatprep.subr.bf16.mxu0 0
    %128 = vmatpush1.bf16.msra.mxu0 0
    %129 = vmatprep.subr.bf16.mxu0 0
    %130 = vmatpush1.bf16.msra.mxu0 0
    %131 = vmatprep.subr.bf16.mxu0 0
    %132 = vmatpush1.bf16.msra.mxu0 0
    %133 = vmatprep.subr.bf16.mxu0 0
    %134 = vmatpush1.bf16.msra.mxu0 0
    %135 = vmatprep.subr.bf16.mxu0 0
    %136 = vmatpush1.bf16.msra.mxu0 0
    %137 = vmatprep.subr.bf16.mxu0 0
    %138 = vmatpush1.bf16.msra.mxu0 0
    %139 = vmatprep.subr.bf16.mxu0 0
    %140 = vmatpush1.bf16.msra.mxu0 0
    %141 = vmatprep.subr.bf16.mxu0 0
    %142 = vmatpush1.bf16.msra.mxu0 0
    %143 = vmatprep.mubr.bf16.mxu0 0
    %144 = vmatmul.mubr.bf16.gmra.mrb[0].mxu0 %v109
    %v145 = vpop.f32.mrb[0].mxu0
    %v146 = vadd.f32 %v95, %v145
    %v147 = vpop.f32.mrb[0].mxu0
    %v148 = vadd.f32 %v99, %v147
    %v149 = vpop.f32.mrb[0].mxu0
    %v150 = vpop.f32.mrb[0].mxu0
    %151 = vdwg.mxu0
    %152 = vmatprep.subr.bf16.mxu0 0
    %153 = vmatpush1.bf16.msra.mxu0 %v80
    %154 = vmatprep.subr.bf16.mxu0 0
    %155 = vmatpush1.bf16.msra.mxu0 %v83
    %156 = vmatprep.subr.bf16.mxu0 0
    %157 = vmatpush1.bf16.msra.mxu0 %v86
    %158 = vmatprep.subr.bf16.mxu0 0
    %159 = vmatpush1.bf16.msra.mxu0 %v89
    %160 = vmatprep.subr.bf16.mxu0 0
    %161 = vmatpush1.bf16.msra.mxu0 0
    %162 = vmatprep.subr.bf16.mxu0 0
    %163 = vmatpush1.bf16.msra.mxu0 0
    %164 = vmatprep.subr.bf16.mxu0 0
    %165 = vmatpush1.bf16.msra.mxu0 0
    %166 = vmatprep.subr.bf16.mxu0 0
    %167 = vmatpush1.bf16.msra.mxu0 0
    %168 = vmatprep.subr.bf16.mxu0 0
    %169 = vmatpush1.bf16.msra.mxu0 0
    %170 = vmatprep.subr.bf16.mxu0 0
    %171 = vmatpush1.bf16.msra.mxu0 0
    %172 = vmatprep.subr.bf16.mxu0 0
    %173 = vmatpush1.bf16.msra.mxu0 0
    %174 = vmatprep.subr.bf16.mxu0 0
    %175 = vmatpush1.bf16.msra.mxu0 0
    %176 = vmatprep.subr.bf16.mxu0 0
    %177 = vmatpush1.bf16.msra.mxu0 0
    %178 = vmatprep.subr.bf16.mxu0 0
    %179 = vmatpush1.bf16.msra.mxu0 0
    %180 = vmatprep.subr.bf16.mxu0 0
    %181 = vmatpush1.bf16.msra.mxu0 0
    %182 = vmatprep.subr.bf16.mxu0 0
    %183 = vmatpush1.bf16.msra.mxu0 0
    %184 = vmatprep.mubr.bf16.mxu0 0
    %185 = vmatmul.mubr.bf16.gmra.mrb[0].mxu0 %v109
    %v186 = vpop.f32.mrb[0].mxu0
    %v187 = vadd.f32 %v103, %v186
    %v188 = vpop.f32.mrb[0].mxu0
    %v189 = vpop.f32.mrb[0].mxu0
    %v190 = vpop.f32.mrb[0].mxu0
    %191 = vdwg.mxu0
    %v192 = vld [vmem:[%s3] sm:$0x3]
    %v193 = vpack.c.bf16 %v192, %v192
    %v194 = vld [vmem:[%s6] sm:$0xff]
    %v195 = vld [vmem:[%s6 + $0x8] sm:$0xff]
    %v196 = vld [vmem:[%s6 + $0x10] sm:$0xff]
    %v197 = vld [vmem:[%s6 + $0x18] sm:$0xff]
    %v198 = vld [vmem:[%s6 + $0x20] sm:$0xff]
    %v199 = vld [vmem:[%s6 + $0x28] sm:$0xff]
    %v200 = vld [vmem:[%s6 + $0x30] sm:$0xff]
    %v201 = vld [vmem:[%s6 + $0x38] sm:$0xff]
    %v202 = vpack.c.bf16 %v195, %v194
    %v203 = vpack.c.bf16 %v197, %v196
    %v204 = vpack.c.bf16 %v199, %v198
    %v205 = vpack.c.bf16 %v201, %v200
    %v206 = vld [vmem:[%s7] sm:$0x1]
    %v208 = vlaneseq
    %v209 = vshrl.u32 %v208, 7
    %v210 = vsub.s32 0, %v209
    %v211 = vrot.slane %v206, %v210
    %v214 = vsel %vm107, %v193, 0
    %216 = vmatprep.subr.bf16.mxu0 0
    %217 = vmatpush1.bf16.msra.mxu0 %v202
    %218 = vmatprep.subr.bf16.mxu0 0
    %219 = vmatpush1.bf16.msra.mxu0 %v203
    %220 = vmatprep.subr.bf16.mxu0 0
    %221 = vmatpush1.bf16.msra.mxu0 %v204
    %222 = vmatprep.subr.bf16.mxu0 0
    %223 = vmatpush1.bf16.msra.mxu0 %v205
    %224 = vmatprep.subr.bf16.mxu0 0
    %225 = vmatpush1.bf16.msra.mxu0 0
    %226 = vmatprep.subr.bf16.mxu0 0
    %227 = vmatpush1.bf16.msra.mxu0 0
    %228 = vmatprep.subr.bf16.mxu0 0
    %229 = vmatpush1.bf16.msra.mxu0 0
    %230 = vmatprep.subr.bf16.mxu0 0
    %231 = vmatpush1.bf16.msra.mxu0 0
    %232 = vmatprep.subr.bf16.mxu0 0
    %233 = vmatpush1.bf16.msra.mxu0 0
    %234 = vmatprep.subr.bf16.mxu0 0
    %235 = vmatpush1.bf16.msra.mxu0 0
    %236 = vmatprep.subr.bf16.mxu0 0
    %237 = vmatpush1.bf16.msra.mxu0 0
    %238 = vmatprep.subr.bf16.mxu0 0
    %239 = vmatpush1.bf16.msra.mxu0 0
    %240 = vmatprep.subr.bf16.mxu0 0
    %241 = vmatpush1.bf16.msra.mxu0 0
    %242 = vmatprep.subr.bf16.mxu0 0
    %243 = vmatpush1.bf16.msra.mxu0 0
    %244 = vmatprep.subr.bf16.mxu0 0
    %245 = vmatpush1.bf16.msra.mxu0 0
    %246 = vmatprep.subr.bf16.mxu0 0
    %247 = vmatpush1.bf16.msra.mxu0 0
    %248 = vmatprep.mubr.bf16.mxu0 0
    %249 = vmatmul.mubr.bf16.gmra.mrb[0].mxu0 %v214
    %v250 = vpop.f32.mrb[0].mxu0
    %v251 = vadd.f32 %v211, %v250
    %v252 = vpop.f32.mrb[0].mxu0
    %v253 = vpop.f32.mrb[0].mxu0
    %v254 = vpop.f32.mrb[0].mxu0
    %255 = vdwg.mxu0
    %v256 = vmax.f32 %v148, -10.0
    %v257 = vmax.f32 %v187, -10.0
    %v258 = vmin.f32 %v256, 10.0
    %v259 = vmin.f32 %v257, 10.0
    %v260 = vmax.f32 %v251, -10.0
    %v261 = vmin.f32 %v260, 10.0
    %v262 = vld [vmem:[%s0] sm:$0xf]
    %v265 = vcombine.low %v146, %v148
    %v267 = vunpack.c.l.s4 1983009808
    %v268 = vunpack.c.0.s8 %v267
    %v269 = vlaneseq
    %v270 = vshrl.u32 %v269, 7
    %v271 = vsub.s32 %v268, %v270
    %v272 = vrot.slane %v265, %v271
    %v274 = vsub.f32 %v262, %v272
    %v275 = vsub.f32 0.0, %v258
    %v276 = vsub.f32 0.0, %v259
    %v277 = vmul.f32 %v275, 1.442695
    %v278 = vpow.pop %v277
    %v279 = vmul.f32 %v276, 1.442695
    %v280 = vpow.pop %v279
    %v283 = vcombine.low %v278, %v280
    %v285 = vunpack.c.l.s4 1983009808
    %v286 = vunpack.c.0.s8 %v285
    %v287 = vlaneseq
    %v288 = vshrl.u32 %v287, 7
    %v289 = vsub.s32 %v286, %v288
    %v290 = vrot.slane %v283, %v289
    %291 = vrot.lane.b32.xlu0 %v290, 124
    %v292 = vpop.permute.xlu0 %291
    %v293 = vrot.slane %v292, 2
    %vm294 = vcmask 1014784
    %v295 = vsel %vm294, %v292, %v293
    %v297 = vmul.f32 %v274, %v295
    %v298 = vld [vmem:[%s1] sm:$0x3]
    %v299 = vsub.f32 %v298, %v251
    %v300 = vsub.f32 0.0, %v261
    %v301 = vmul.f32 %v300, 1.442695
    %v302 = vpow.pop %v301
    %304 = vrot.lane.b32.xlu0 %v302, 96
    %v305 = vpop.permute.xlu0 %304
    %v307 = vmul.f32 %v299, %v305
    %v308 = vmul.f32 %v297, %v297
    %v311 = vunpack.c.l.s4 1983009808
    %v312 = vunpack.c.0.s8 %v311
    %v313 = vlaneseq
    %v314 = vshrl.u32 %v313, 7
    %v315 = vsub.s32 %v312, %v314
    %v316 = vrot.slane %v308, %v315
    %v317 = vcombine.high %v316, %v316
    %vm320 = vcmask 1041408
    %v321 = vsel %vm320, %v316, 0.0
    %vm322 = vcmask 25600
    %v323 = vsel %vm322, %v317, 0.0
    %v324 = vadd.f32 %v321, %v323
    %325 = vadd.xlane.f32.xlu0 %v324
    %v326 = vpop.xlane.xlu0 %325
    %v327 = vrot.slane %v326, 4
    %v328 = vadd.f32 %v326, %v327
    %v329 = vrot.slane %v328, 2
    %v330 = vadd.f32 %v328, %v329
    %v331 = vrot.slane %v330, 1
    %v332 = vadd.f32 %v330, %v331
    %s333 = vtos %v332
    %s334 = smul.f32 %s333, 0.5
    %337 = vrot.lane.b32.xlu0 %v258, 124
    %v338 = vpop.permute.xlu0 %337
    %339 = vrot.lane.b32.xlu0 %v259, 124
    %v340 = vpop.permute.xlu0 %339
    %v341 = vsel %vm294, %v338, %v340
    %v344 = vsel %vm320, %v341, 0.0
    %v345 = vsel %vm322, %v340, 0.0
    %v346 = vadd.f32 %v344, %v345
    %347 = vadd.xlane.f32.xlu0 %v346
    %v348 = vpop.xlane.xlu0 %347
    %v349 = vrot.slane %v348, 4
    %v350 = vadd.f32 %v348, %v349
    %v351 = vrot.slane %v350, 2
    %v352 = vadd.f32 %v350, %v351
    %v353 = vrot.slane %v352, 1
    %v354 = vadd.f32 %v352, %v353
    %s355 = vtos %v354
    %s356 = sadd.f32 %s334, %s355
    %v357 = vrcp.pop 2.0
    %s358 = vtos %v357
    %s359 = smul.f32 %s356, %s358
    %s360 = sadd.f32 %s359, 121.29989
    %v361 = vmul.f32 %v307, %v307
    %vm362 = vcmask 254976
    %v363 = vsel %vm362, %v361, 0.0
    %364 = vadd.xlane.f32.xlu0 %v363
    %v365 = vpop.xlane.xlu0 %364
    %v366 = vrot.slane %v365, 4
    %v367 = vadd.f32 %v365, %v366
    %v368 = vrot.slane %v367, 2
    %v369 = vadd.f32 %v367, %v368
    %v370 = vrot.slane %v369, 1
    %v371 = vadd.f32 %v369, %v370
    %s372 = vtos %v371
    %s373 = smul.f32 %s372, 0.5
    %375 = vrot.lane.b32.xlu0 %v261, 96
    %v376 = vpop.permute.xlu0 %375
    %v378 = vsel %vm362, %v376, 0.0
    %379 = vadd.xlane.f32.xlu0 %v378
    %v380 = vpop.xlane.xlu0 %379
    %v381 = vrot.slane %v380, 4
    %v382 = vadd.f32 %v380, %v381
    %v383 = vrot.slane %v382, 2
    %v384 = vadd.f32 %v382, %v383
    %v385 = vrot.slane %v384, 1
    %v386 = vadd.f32 %v384, %v385
    %s387 = vtos %v386
    %s388 = sadd.f32 %s373, %s387
    %v389 = vrcp.pop 2.0
    %s390 = vtos %v389
    %s391 = smul.f32 %s388, %s390
    %s392 = sadd.f32 %s391, 29.406033
    %v393 = vlaneseq
    %v394 = vshrl.u32 %v393, 7
    %v395 = vlaneseq
    %v396 = vand.u32 %v395, 127
    %v397 = vmul.u32 %v396, 4
    %vm398 = vcmp.ge.s32.totalorder %v394, %v397
    %v399 = vadd.s32 %v396, 1
    %v400 = vmul.u32 %v399, 4
    %vm401 = vcmp.lt.s32.totalorder %v394, %v400
    %vm402 = vmand %vm398, %vm401
    %v403 = vsel %vm402, 1, 0
    %v404 = vcvt.s32.f32 %v403
    %vm405 = vcmask 15360
    %v407 = vsel %vm405, %v404, 0
    %v409 = vsel %vm320, %v146, 0
    %v411 = vsel %vm320, %v148, 0
    %v414 = vsel %vm320, %v187, 0
    %416 = vmatprep.subr.mxu0 %v411
    %417 = vmatpush1.msra.mxu0 %v409
    %418 = vmatprep.subr.mxu0 0.0
    %419 = vmatpush1.msra.mxu0 0.0
    %420 = vmatprep.subr.mxu0 0.0
    %421 = vmatpush1.msra.mxu0 0.0
    %422 = vmatprep.subr.mxu0 0.0
    %423 = vmatpush1.msra.mxu0 0.0
    %424 = vmatprep.subr.mxu0 0.0
    %425 = vmatpush1.msra.mxu0 0.0
    %426 = vmatprep.subr.mxu0 0.0
    %427 = vmatpush1.msra.mxu0 0.0
    %428 = vmatprep.subr.mxu0 0.0
    %429 = vmatpush1.msra.mxu0 0.0
    %430 = vmatprep.subr.mxu0 0.0
    %431 = vmatpush1.msra.mxu0 0.0
    %432 = vmatprep.subr.mxu0 0.0
    %433 = vmatpush1.msra.mxu0 0.0
    %434 = vmatprep.subr.mxu0 0.0
    %435 = vmatpush1.msra.mxu0 0.0
    %436 = vmatprep.subr.mxu0 0.0
    %437 = vmatpush1.msra.mxu0 0.0
    %438 = vmatprep.subr.mxu0 0.0
    %439 = vmatpush1.msra.mxu0 0.0
    %440 = vmatprep.subr.mxu0 0.0
    %441 = vmatpush1.msra.mxu0 0.0
    %442 = vmatprep.subr.mxu0 0.0
    %443 = vmatpush1.msra.mxu0 0.0
    %444 = vmatprep.subr.mxu0 0.0
    %445 = vmatpush1.msra.mxu0 0.0
    %446 = vmatprep.subr.mxu0 0.0
    %447 = vmatpush1.msra.mxu0 0.0
    %448 = vmatprep.subr.mxu0 0.0
    %449 = vmatpush1.msra.mxu0 0.0
    %450 = vmatprep.subr.mxu0 0.0
    %451 = vmatpush1.msra.mxu0 0.0
    %452 = vmatprep.subr.mxu0 0.0
    %453 = vmatpush1.msra.mxu0 0.0
    %454 = vmatprep.subr.mxu0 0.0
    %455 = vmatpush1.msra.mxu0 0.0
    %456 = vmatprep.subr.mxu0 0.0
    %457 = vmatpush1.msra.mxu0 0.0
    %458 = vmatprep.subr.mxu0 0.0
    %459 = vmatpush1.msra.mxu0 0.0
    %460 = vmatprep.subr.mxu0 0.0
    %461 = vmatpush1.msra.mxu0 0.0
    %462 = vmatprep.subr.mxu0 0.0
    %463 = vmatpush1.msra.mxu0 0.0
    %464 = vmatprep.subr.mxu0 0.0
    %465 = vmatpush1.msra.mxu0 0.0
    %466 = vmatprep.subr.mxu0 0.0
    %467 = vmatpush1.msra.mxu0 0.0
    %468 = vmatprep.subr.mxu0 0.0
    %469 = vmatpush1.msra.mxu0 0.0
    %470 = vmatprep.subr.mxu0 0.0
    %471 = vmatpush1.msra.mxu0 0.0
    %472 = vmatprep.subr.mxu0 0.0
    %473 = vmatpush1.msra.mxu0 0.0
    %474 = vmatprep.subr.mxu0 0.0
    %475 = vmatpush1.msra.mxu0 0.0
    %476 = vmatprep.subr.mxu0 0.0
    %477 = vmatpush1.msra.mxu0 0.0
    %478 = vmatprep.subr.mxu0 0.0
    %479 = vmatpush1.msra.mxu0 0.0
    %480 = vmatprep.mubr.f32.mxu0 0.0
    %481 = vmatmul.mubr.f32.gmra.mrb[0].mxu0 %v407
    %v482 = vpop.f32.mrb[0].mxu0
    %v483 = vadd.f32 0.0, %v482
    %v484 = vpop.f32.mrb[0].mxu0
    %v485 = vadd.f32 0.0, %v484
    %486 = vdwg.mxu0
    %487 = vmatprep.subr.mxu0 0.0
    %488 = vmatpush1.msra.mxu0 %v414
    %489 = vmatprep.subr.mxu0 0.0
    %490 = vmatpush1.msra.mxu0 0.0
    %491 = vmatprep.subr.mxu0 0.0
    %492 = vmatpush1.msra.mxu0 0.0
    %493 = vmatprep.subr.mxu0 0.0
    %494 = vmatpush1.msra.mxu0 0.0
    %495 = vmatprep.subr.mxu0 0.0
    %496 = vmatpush1.msra.mxu0 0.0
    %497 = vmatprep.subr.mxu0 0.0
    %498 = vmatpush1.msra.mxu0 0.0
    %499 = vmatprep.subr.mxu0 0.0
    %500 = vmatpush1.msra.mxu0 0.0
    %501 = vmatprep.subr.mxu0 0.0
    %502 = vmatpush1.msra.mxu0 0.0
    %503 = vmatprep.subr.mxu0 0.0
    %504 = vmatpush1.msra.mxu0 0.0
    %505 = vmatprep.subr.mxu0 0.0
    %506 = vmatpush1.msra.mxu0 0.0
    %507 = vmatprep.subr.mxu0 0.0
    %508 = vmatpush1.msra.mxu0 0.0
    %509 = vmatprep.subr.mxu0 0.0
    %510 = vmatpush1.msra.mxu0 0.0
    %511 = vmatprep.subr.mxu0 0.0
    %512 = vmatpush1.msra.mxu0 0.0
    %513 = vmatprep.subr.mxu0 0.0
    %514 = vmatpush1.msra.mxu0 0.0
    %515 = vmatprep.subr.mxu0 0.0
    %516 = vmatpush1.msra.mxu0 0.0
    %517 = vmatprep.subr.mxu0 0.0
    %518 = vmatpush1.msra.mxu0 0.0
    %519 = vmatprep.subr.mxu0 0.0
    %520 = vmatpush1.msra.mxu0 0.0
    %521 = vmatprep.subr.mxu0 0.0
    %522 = vmatpush1.msra.mxu0 0.0
    %523 = vmatprep.subr.mxu0 0.0
    %524 = vmatpush1.msra.mxu0 0.0
    %525 = vmatprep.subr.mxu0 0.0
    %526 = vmatpush1.msra.mxu0 0.0
    %527 = vmatprep.subr.mxu0 0.0
    %528 = vmatpush1.msra.mxu0 0.0
    %529 = vmatprep.subr.mxu0 0.0
    %530 = vmatpush1.msra.mxu0 0.0
    %531 = vmatprep.subr.mxu0 0.0
    %532 = vmatpush1.msra.mxu0 0.0
    %533 = vmatprep.subr.mxu0 0.0
    %534 = vmatpush1.msra.mxu0 0.0
    %535 = vmatprep.subr.mxu0 0.0
    %536 = vmatpush1.msra.mxu0 0.0
    %537 = vmatprep.subr.mxu0 0.0
    %538 = vmatpush1.msra.mxu0 0.0
    %539 = vmatprep.subr.mxu0 0.0
    %540 = vmatpush1.msra.mxu0 0.0
    %541 = vmatprep.subr.mxu0 0.0
    %542 = vmatpush1.msra.mxu0 0.0
    %543 = vmatprep.subr.mxu0 0.0
    %544 = vmatpush1.msra.mxu0 0.0
    %545 = vmatprep.subr.mxu0 0.0
    %546 = vmatpush1.msra.mxu0 0.0
    %547 = vmatprep.subr.mxu0 0.0
    %548 = vmatpush1.msra.mxu0 0.0
    %549 = vmatprep.subr.mxu0 0.0
    %550 = vmatpush1.msra.mxu0 0.0
    %551 = vmatprep.mubr.f32.mxu0 0.0
    %552 = vmatmul.mubr.f32.gmra.mrb[0].mxu0 %v407
    %v553 = vpop.f32.mrb[0].mxu0
    %v554 = vadd.f32 0.0, %v553
    %v555 = vpop.f32.mrb[0].mxu0
    %556 = vdwg.mxu0
    %v558 = vsel %vm320, %v251, 0
    %560 = vmatprep.subr.mxu0 0.0
    %561 = vmatpush1.msra.mxu0 %v558
    %562 = vmatprep.subr.mxu0 0.0
    %563 = vmatpush1.msra.mxu0 0.0
    %564 = vmatprep.subr.mxu0 0.0
    %565 = vmatpush1.msra.mxu0 0.0
    %566 = vmatprep.subr.mxu0 0.0
    %567 = vmatpush1.msra.mxu0 0.0
    %568 = vmatprep.subr.mxu0 0.0
    %569 = vmatpush1.msra.mxu0 0.0
    %570 = vmatprep.subr.mxu0 0.0
    %571 = vmatpush1.msra.mxu0 0.0
    %572 = vmatprep.subr.mxu0 0.0
    %573 = vmatpush1.msra.mxu0 0.0
    %574 = vmatprep.subr.mxu0 0.0
    %575 = vmatpush1.msra.mxu0 0.0
    %576 = vmatprep.subr.mxu0 0.0
    %577 = vmatpush1.msra.mxu0 0.0
    %578 = vmatprep.subr.mxu0 0.0
    %579 = vmatpush1.msra.mxu0 0.0
    %580 = vmatprep.subr.mxu0 0.0
    %581 = vmatpush1.msra.mxu0 0.0
    %582 = vmatprep.subr.mxu0 0.0
    %583 = vmatpush1.msra.mxu0 0.0
    %584 = vmatprep.subr.mxu0 0.0
    %585 = vmatpush1.msra.mxu0 0.0
    %586 = vmatprep.subr.mxu0 0.0
    %587 = vmatpush1.msra.mxu0 0.0
    %588 = vmatprep.subr.mxu0 0.0
    %589 = vmatpush1.msra.mxu0 0.0
    %590 = vmatprep.subr.mxu0 0.0
    %591 = vmatpush1.msra.mxu0 0.0
    %592 = vmatprep.subr.mxu0 0.0
    %593 = vmatpush1.msra.mxu0 0.0
    %594 = vmatprep.subr.mxu0 0.0
    %595 = vmatpush1.msra.mxu0 0.0
    %596 = vmatprep.subr.mxu0 0.0
    %597 = vmatpush1.msra.mxu0 0.0
    %598 = vmatprep.subr.mxu0 0.0
    %599 = vmatpush1.msra.mxu0 0.0
    %600 = vmatprep.subr.mxu0 0.0
    %601 = vmatpush1.msra.mxu0 0.0
    %602 = vmatprep.subr.mxu0 0.0
    %603 = vmatpush1.msra.mxu0 0.0
    %604 = vmatprep.subr.mxu0 0.0
    %605 = vmatpush1.msra.mxu0 0.0
    %606 = vmatprep.subr.mxu0 0.0
    %607 = vmatpush1.msra.mxu0 0.0
    %608 = vmatprep.subr.mxu0 0.0
    %609 = vmatpush1.msra.mxu0 0.0
    %610 = vmatprep.subr.mxu0 0.0
    %611 = vmatpush1.msra.mxu0 0.0
    %612 = vmatprep.subr.mxu0 0.0
    %613 = vmatpush1.msra.mxu0 0.0
    %614 = vmatprep.subr.mxu0 0.0
    %615 = vmatpush1.msra.mxu0 0.0
    %616 = vmatprep.subr.mxu0 0.0
    %617 = vmatpush1.msra.mxu0 0.0
    %618 = vmatprep.subr.mxu0 0.0
    %619 = vmatpush1.msra.mxu0 0.0
    %620 = vmatprep.subr.mxu0 0.0
    %621 = vmatpush1.msra.mxu0 0.0
    %622 = vmatprep.subr.mxu0 0.0
    %623 = vmatpush1.msra.mxu0 0.0
    %624 = vmatprep.mubr.f32.mxu0 0.0
    %625 = vmatmul.mubr.f32.gmra.mrb[0].mxu0 %v407
    %v626 = vpop.f32.mrb[0].mxu0
    %v627 = vadd.f32 0.0, %v626
    %v628 = vpop.f32.mrb[0].mxu0
    %629 = vdwg.mxu0
    %v630 = vld [vmem:[%s14] sm:$0xf]
    %v633 = vunpack.c.l.s4 1983009808
    %v634 = vunpack.c.0.s8 %v633
    %v635 = vlaneseq
    %v636 = vshrl.u32 %v635, 7
    %v637 = vsub.s32 %v634, %v636
    %v638 = vrot.slane %v630, %v637
    %v639 = vcombine.high %v638, %v638
    %v640 = vsel %vm320, %v638, 0
    %v642 = vsel %vm320, %v639, 0
    %644 = vmatprep.subr.mxu0 %v642
    %645 = vmatpush1.msra.mxu0 %v640
    %646 = vmatprep.subr.mxu0 0.0
    %647 = vmatpush1.msra.mxu0 0.0
    %648 = vmatprep.subr.mxu0 0.0
    %649 = vmatpush1.msra.mxu0 0.0
    %650 = vmatprep.subr.mxu0 0.0
    %651 = vmatpush1.msra.mxu0 0.0
    %652 = vmatprep.subr.mxu0 0.0
    %653 = vmatpush1.msra.mxu0 0.0
    %654 = vmatprep.subr.mxu0 0.0
    %655 = vmatpush1.msra.mxu0 0.0
    %656 = vmatprep.subr.mxu0 0.0
    %657 = vmatpush1.msra.mxu0 0.0
    %658 = vmatprep.subr.mxu0 0.0
    %659 = vmatpush1.msra.mxu0 0.0
    %660 = vmatprep.subr.mxu0 0.0
    %661 = vmatpush1.msra.mxu0 0.0
    %662 = vmatprep.subr.mxu0 0.0
    %663 = vmatpush1.msra.mxu0 0.0
    %664 = vmatprep.subr.mxu0 0.0
    %665 = vmatpush1.msra.mxu0 0.0
    %666 = vmatprep.subr.mxu0 0.0
    %667 = vmatpush1.msra.mxu0 0.0
    %668 = vmatprep.subr.mxu0 0.0
    %669 = vmatpush1.msra.mxu0 0.0
    %670 = vmatprep.subr.mxu0 0.0
    %671 = vmatpush1.msra.mxu0 0.0
    %672 = vmatprep.subr.mxu0 0.0
    %673 = vmatpush1.msra.mxu0 0.0
    %674 = vmatprep.subr.mxu0 0.0
    %675 = vmatpush1.msra.mxu0 0.0
    %676 = vmatprep.subr.mxu0 0.0
    %677 = vmatpush1.msra.mxu0 0.0
    %678 = vmatprep.subr.mxu0 0.0
    %679 = vmatpush1.msra.mxu0 0.0
    %680 = vmatprep.subr.mxu0 0.0
    %681 = vmatpush1.msra.mxu0 0.0
    %682 = vmatprep.subr.mxu0 0.0
    %683 = vmatpush1.msra.mxu0 0.0
    %684 = vmatprep.subr.mxu0 0.0
    %685 = vmatpush1.msra.mxu0 0.0
    %686 = vmatprep.subr.mxu0 0.0
    %687 = vmatpush1.msra.mxu0 0.0
    %688 = vmatprep.subr.mxu0 0.0
    %689 = vmatpush1.msra.mxu0 0.0
    %690 = vmatprep.subr.mxu0 0.0
    %691 = vmatpush1.msra.mxu0 0.0
    %692 = vmatprep.subr.mxu0 0.0
    %693 = vmatpush1.msra.mxu0 0.0
    %694 = vmatprep.subr.mxu0 0.0
    %695 = vmatpush1.msra.mxu0 0.0
    %696 = vmatprep.subr.mxu0 0.0
    %697 = vmatpush1.msra.mxu0 0.0
    %698 = vmatprep.subr.mxu0 0.0
    %699 = vmatpush1.msra.mxu0 0.0
    %700 = vmatprep.subr.mxu0 0.0
    %701 = vmatpush1.msra.mxu0 0.0
    %702 = vmatprep.subr.mxu0 0.0
    %703 = vmatpush1.msra.mxu0 0.0
    %704 = vmatprep.subr.mxu0 0.0
    %705 = vmatpush1.msra.mxu0 0.0
    %706 = vmatprep.subr.mxu0 0.0
    %707 = vmatpush1.msra.mxu0 0.0
    %708 = vmatprep.mubr.f32.mxu0 0.0
    %709 = vmatmul.mubr.f32.gmra.mrb[0].mxu0 %v407
    %v710 = vpop.f32.mrb[0].mxu0
    %v711 = vadd.f32 0.0, %v710
    %v712 = vpop.f32.mrb[0].mxu0
    %v713 = vadd.f32 0.0, %v712
    %714 = vdwg.mxu0
    %v715 = vmax.f32 %v485, -10.0
    %v716 = vmax.f32 %v554, -10.0
    %v717 = vmin.f32 %v715, 10.0
    %v718 = vmin.f32 %v716, 10.0
    %v719 = vmax.f32 %v627, -10.0
    %v720 = vmin.f32 %v719, 10.0
    %v721 = vmul.f32 %v717, 1.442695
    %v722 = vpow.pop %v721
    %v723 = vmul.f32 %v718, 1.442695
    %v724 = vpow.pop %v723
    %v725 = vld [vmem:[%s8] sm:$0xff]
    %v726 = vld [vmem:[%s8 + $0x8] sm:$0xff]
    %729 = vrot.lane.b32.xlu0 %v725, 4
    %v730 = vpop.permute.xlu0 %729
    %731 = vrot.lane.b32.xlu0 %v726, 4
    %v732 = vpop.permute.xlu0 %731
    %vm733 = vcmask 31744
    %v734 = vsel %vm733, %v730, %v732
    %v737 = vmul.f32 %v722, %v730
    %v738 = vmul.f32 %v724, %v734
    %741 = vrot.lane.b32.xlu0 %v737, 124
    %v742 = vpop.permute.xlu0 %741
    %743 = vrot.lane.b32.xlu0 %v738, 124
    %v744 = vpop.permute.xlu0 %743
    %v745 = vsel %vm294, %v742, %v744
    %v748 = vadd.f32 %v483, %v745
    %v749 = vadd.f32 %v485, %v744
    %v750 = vmul.f32 %v720, 1.442695
    %v751 = vpow.pop %v750
    %v752 = vld [vmem:[%s9] sm:$0xff]
    %754 = vrot.lane.b32.xlu0 %v752, 32
    %v755 = vpop.permute.xlu0 %754
    %v757 = vmul.f32 %v751, %v755
    %759 = vrot.lane.b32.xlu0 %v757, 96
    %v760 = vpop.permute.xlu0 %759
    %v762 = vadd.f32 %v627, %v760
    %v763 = vmul.f32 %v748, %v748
    %765 = vrot.lane.b32.xlu0 %v763, 106
    %v766 = vpop.permute.xlu0 %765
    %v768 = vadd.f32 %v763, %v766
    %769 = vrot.lane.b32.xlu0 %v763, 84
    %v770 = vpop.permute.xlu0 %769
    %v772 = vadd.f32 %v768, %v770
    %774 = vrot.lane.b32.xlu0 %v748, 62
    %v775 = vpop.permute.xlu0 %774
    %v777 = vmul.f32 %v748, %v775
    %779 = vrot.lane.b32.xlu0 %v777, 106
    %v780 = vpop.permute.xlu0 %779
    %v782 = vadd.f32 %v777, %v780
    %784 = vrot.lane.b32.xlu0 %v749, 62
    %v785 = vpop.permute.xlu0 %784
    %vm786 = vcmask 506880
    %v787 = vsel %vm786, %v775, %v785
    %v789 = vmul.f32 %v748, %v787
    %791 = vrot.lane.b32.xlu0 %v789, 84
    %v792 = vpop.permute.xlu0 %791
    %v794 = vadd.f32 %v782, %v792
    %v795 = vmul.f32 %v749, %v749
    %797 = vrot.lane.b32.xlu0 %v795, 84
    %v798 = vpop.permute.xlu0 %797
    %vm799 = vcmask 687104
    %v800 = vsel %vm799, %v770, %v798
    %v802 = vadd.f32 %v768, %v800
    %v803 = vsub.f32 %v772, 1.0
    %v804 = vmul.f32 %v803, %v803
    %v805 = vmul.f32 %v794, 2.0
    %v806 = vmul.f32 %v805, %v794
    %v807 = vadd.f32 %v804, %v806
    %v808 = vsub.f32 %v802, 1.0
    %v809 = vmul.f32 %v808, %v808
    %811 = vrot.lane.b32.xlu0 %v809, 62
    %v812 = vpop.permute.xlu0 %811
    %v814 = vadd.f32 %v807, %v812
    %vm815 = vcmask 179200
    %v816 = vsel %vm815, %v814, 0.0
    %817 = vadd.xlane.f32.xlu0 %v816
    %v818 = vpop.xlane.xlu0 %817
    %v819 = vrot.slane %v818, 4
    %v820 = vadd.f32 %v818, %v819
    %v821 = vrot.slane %v820, 2
    %v822 = vadd.f32 %v820, %v821
    %v823 = vrot.slane %v822, 1
    %v824 = vadd.f32 %v822, %v823
    %s825 = vtos %v824
    %v826 = vrcp.pop 704.0
    %s827 = vtos %v826
    %s828 = smul.f32 %s825, %s827
    %v829 = vadd.f32 %v772, 1e-12
    %v830 = vrsqrt.pop %v829
    %v831 = vmul.f32 %v748, %v830
    %833 = vrot.lane.b32.xlu0 %v830, 22
    %v834 = vpop.permute.xlu0 %833
    %v836 = vmul.f32 %v748, %v834
    %837 = vrot.lane.b32.xlu0 %v830, 44
    %v838 = vpop.permute.xlu0 %837
    %v840 = vmul.f32 %v748, %v838
    %v841 = vmul.f32 %v831, %v775
    %v842 = vmul.f32 %v836, %v775
    %844 = vrot.lane.b32.xlu0 %v842, 106
    %v845 = vpop.permute.xlu0 %844
    %v847 = vadd.f32 %v841, %v845
    %v848 = vmul.f32 %v840, %v787
    %850 = vrot.lane.b32.xlu0 %v848, 84
    %v851 = vpop.permute.xlu0 %850
    %v853 = vadd.f32 %v847, %v851
    %v854 = vmul.f32 %v853, %v831
    %856 = vrot.lane.b32.xlu0 %v854, 66
    %v857 = vpop.permute.xlu0 %856
    %v859 = vsub.f32 %v748, %v857
    %861 = vrot.lane.b32.xlu0 %v836, 106
    %v862 = vpop.permute.xlu0 %861
    %v864 = vmul.f32 %v853, %v862
    %866 = vrot.lane.b32.xlu0 %v864, 88
    %v867 = vpop.permute.xlu0 %866
    %v869 = vsub.f32 %v748, %v867
    %871 = vrot.lane.b32.xlu0 %v840, 84
    %v872 = vpop.permute.xlu0 %871
    %v874 = vmul.f32 %v853, %v872
    %876 = vrot.lane.b32.xlu0 %v874, 110
    %v877 = vpop.permute.xlu0 %876
    %v879 = vsub.f32 %v748, %v877
    %v880 = vsub.f32 %v749, %v877
    %v881 = vmul.f32 %v859, %v859
    %v882 = vmul.f32 %v869, %v869
    %884 = vrot.lane.b32.xlu0 %v882, 106
    %v885 = vpop.permute.xlu0 %884
    %v887 = vadd.f32 %v881, %v885
    %v888 = vmul.f32 %v879, %v879
    %v889 = vmul.f32 %v880, %v880
    %892 = vrot.lane.b32.xlu0 %v888, 84
    %v893 = vpop.permute.xlu0 %892
    %894 = vrot.lane.b32.xlu0 %v889, 84
    %v895 = vpop.permute.xlu0 %894
    %v896 = vsel %vm799, %v893, %v895
    %v898 = vadd.f32 %v887, %v896
    %v899 = vadd.f32 %v898, 1e-12
    %v900 = vrsqrt.pop %v899
    %v901 = vmul.f32 %v859, %v900
    %903 = vrot.lane.b32.xlu0 %v900, 22
    %v904 = vpop.permute.xlu0 %903
    %v906 = vmul.f32 %v869, %v904
    %907 = vrot.lane.b32.xlu0 %v900, 44
    %v908 = vpop.permute.xlu0 %907
    %v910 = vmul.f32 %v879, %v908
    %v911 = vmul.f32 %v880, %v908
    %914 = vrot.lane.b32.xlu0 %v910, 40
    %v915 = vpop.permute.xlu0 %914
    %916 = vrot.lane.b32.xlu0 %v911, 40
    %v917 = vpop.permute.xlu0 %916
    %vm918 = vcmask 326656
    %v919 = vsel %vm918, %v915, %v917
    %v921 = vmul.f32 %v836, %v919
    %923 = vrot.lane.b32.xlu0 %v906, 84
    %v924 = vpop.permute.xlu0 %923
    %v926 = vmul.f32 %v840, %v924
    %928 = vrot.lane.b32.xlu0 %v926, 106
    %v929 = vpop.permute.xlu0 %928
    %v931 = vsub.f32 %v921, %v929
    %933 = vrot.lane.b32.xlu0 %v901, 106
    %v934 = vpop.permute.xlu0 %933
    %v936 = vmul.f32 %v840, %v934
    %937 = vrot.lane.b32.xlu0 %v910, 18
    %v938 = vpop.permute.xlu0 %937
    %939 = vrot.lane.b32.xlu0 %v911, 18
    %v940 = vpop.permute.xlu0 %939
    %vm941 = vcmask 146432
    %v942 = vsel %vm941, %v938, %v940
    %v944 = vmul.f32 %v831, %v942
    %946 = vrot.lane.b32.xlu0 %v944, 44
    %v947 = vpop.permute.xlu0 %946
    %v949 = vsub.f32 %v936, %v947
    %950 = vrot.lane.b32.xlu0 %v906, 40
    %v951 = vpop.permute.xlu0 %950
    %v953 = vmul.f32 %v831, %v951
    %954 = vrot.lane.b32.xlu0 %v901, 84
    %v955 = vpop.permute.xlu0 %954
    %v957 = vmul.f32 %v836, %v955
    %959 = vrot.lane.b32.xlu0 %v957, 106
    %v960 = vpop.permute.xlu0 %959
    %v962 = vsub.f32 %v953, %v960
    %964 = vrot.lane.b32.xlu0 %v931, 110
    %v965 = vpop.permute.xlu0 %964
    %968 = vrot.lane.b32.xlu0 %v949, 110
    %v969 = vpop.permute.xlu0 %968
    %972 = vrot.lane.b32.xlu0 %v962, 48
    %v973 = vpop.permute.xlu0 %972
    %976 = vrot.lane.b32.xlu0 %v711, 70
    %v977 = vpop.permute.xlu0 %976
    %v979 = vsel %vm815, %v831, %v836
    %vm980 = vcmask 359424
    %v981 = vsel %vm980, %v979, %v840
    %vm982 = vcmask 539648
    %v983 = vsel %vm982, %v981, %v901
    %vm984 = vcmask 719872
    %v985 = vsel %vm984, %v983, %v906
    %vm986 = vcmask 900096
    %v987 = vsel %vm986, %v985, %v910
    %v988 = vsel %vm733, %v911, %v965
    %vm989 = vcmask 211968
    %v990 = vsel %vm989, %v988, %v969
    %vm991 = vcmask 392192
    %v992 = vsel %vm991, %v990, %v973
    %vm993 = vcmask 572416
    %v994 = vsel %vm993, %v992, %v977
    %v995 = vld [vmem:[%s10] sm:$0xff]
    %v996 = vld [vmem:[%s10 + $0x8] sm:$0xff]
    %v997 = vld [vmem:[%s10 + $0x10] sm:$0xff]
    %v998 = vld [vmem:[%s10 + $0x18] sm:$0xff]
    %v999 = vld [vmem:[%s10 + $0x20] sm:$0xff]
    %v1000 = vld [vmem:[%s10 + $0x28] sm:$0xff]
    %v1001 = vld [vmem:[%s10 + $0x30] sm:$0xff]
    %v1002 = vld [vmem:[%s10 + $0x38] sm:$0xff]
    %v1003 = vld [vmem:[%s10 + $0x40] sm:$0xff]
    %v1004 = vld [vmem:[%s10 + $0x48] sm:$0xff]
    %v1005 = vld [vmem:[%s10 + $0x50] sm:$0xff]
    %v1006 = vld [vmem:[%s10 + $0x58] sm:$0xff]
    %v1007 = vld [vmem:[%s10 + $0x60] sm:$0xff]
    %v1008 = vld [vmem:[%s10 + $0x68] sm:$0xff]
    %v1009 = vld [vmem:[%s10 + $0x70] sm:$0xff]
    %v1010 = vld [vmem:[%s10 + $0x78] sm:$0xff]
    %v1011 = vld [vmem:[%s10 + $0x80] sm:$0xff]
    %v1012 = vld [vmem:[%s10 + $0x88] sm:$0xff]
    %v1013 = vld [vmem:[%s10 + $0x90] sm:$0xff]
    %v1014 = vld [vmem:[%s10 + $0x98] sm:$0xff]
    %v1015 = vld [vmem:[%s10 + $0xa0] sm:$0xff]
    %v1016 = vld [vmem:[%s10 + $0xa8] sm:$0xff]
    %v1017 = vld [vmem:[%s10 + $0xb0] sm:$0xff]
    %v1018 = vld [vmem:[%s10 + $0xb8] sm:$0xff]
    %v1019 = vld [vmem:[%s10 + $0xc0] sm:$0xff]
    %v1020 = vld [vmem:[%s10 + $0xc8] sm:$0xff]
    %vm1021 = vcmask 654336
    %v1023 = vsel %vm1021, %v994, 0
    %1025 = vmatprep.subr.mxu0 0.0
    %1026 = vmatpush1.msra.mxu0 %v995
    %1027 = vmatprep.subr.mxu0 0.0
    %1028 = vmatpush1.msra.mxu0 %v996
    %1029 = vmatprep.subr.mxu0 0.0
    %1030 = vmatpush1.msra.mxu0 %v997
    %1031 = vmatprep.subr.mxu0 0.0
    %1032 = vmatpush1.msra.mxu0 %v998
    %1033 = vmatprep.subr.mxu0 0.0
    %1034 = vmatpush1.msra.mxu0 %v999
    %1035 = vmatprep.subr.mxu0 0.0
    %1036 = vmatpush1.msra.mxu0 %v1000
    %1037 = vmatprep.subr.mxu0 0.0
    %1038 = vmatpush1.msra.mxu0 %v1001
    %1039 = vmatprep.subr.mxu0 0.0
    %1040 = vmatpush1.msra.mxu0 %v1002
    %1041 = vmatprep.subr.mxu0 0.0
    %1042 = vmatpush1.msra.mxu0 %v1003
    %1043 = vmatprep.subr.mxu0 0.0
    %1044 = vmatpush1.msra.mxu0 %v1004
    %1045 = vmatprep.subr.mxu0 0.0
    %1046 = vmatpush1.msra.mxu0 %v1005
    %1047 = vmatprep.subr.mxu0 0.0
    %1048 = vmatpush1.msra.mxu0 %v1006
    %1049 = vmatprep.subr.mxu0 0.0
    %1050 = vmatpush1.msra.mxu0 %v1007
    %1051 = vmatprep.subr.mxu0 0.0
    %1052 = vmatpush1.msra.mxu0 %v1008
    %1053 = vmatprep.subr.mxu0 0.0
    %1054 = vmatpush1.msra.mxu0 %v1009
    %1055 = vmatprep.subr.mxu0 0.0
    %1056 = vmatpush1.msra.mxu0 %v1010
    %1057 = vmatprep.subr.mxu0 0.0
    %1058 = vmatpush1.msra.mxu0 %v1011
    %1059 = vmatprep.subr.mxu0 0.0
    %1060 = vmatpush1.msra.mxu0 %v1012
    %1061 = vmatprep.subr.mxu0 0.0
    %1062 = vmatpush1.msra.mxu0 %v1013
    %1063 = vmatprep.subr.mxu0 0.0
    %1064 = vmatpush1.msra.mxu0 %v1014
    %1065 = vmatprep.subr.mxu0 0.0
    %1066 = vmatpush1.msra.mxu0 %v1015
    %1067 = vmatprep.subr.mxu0 0.0
    %1068 = vmatpush1.msra.mxu0 %v1016
    %1069 = vmatprep.subr.mxu0 0.0
    %1070 = vmatpush1.msra.mxu0 %v1017
    %1071 = vmatprep.subr.mxu0 0.0
    %1072 = vmatpush1.msra.mxu0 %v1018
    %1073 = vmatprep.subr.mxu0 0.0
    %1074 = vmatpush1.msra.mxu0 %v1019
    %1075 = vmatprep.subr.mxu0 0.0
    %1076 = vmatpush1.msra.mxu0 %v1020
    %1077 = vmatprep.subr.mxu0 0.0
    %1078 = vmatpush1.msra.mxu0 0.0
    %1079 = vmatprep.subr.mxu0 0.0
    %1080 = vmatpush1.msra.mxu0 0.0
    %1081 = vmatprep.subr.mxu0 0.0
    %1082 = vmatpush1.msra.mxu0 0.0
    %1083 = vmatprep.subr.mxu0 0.0
    %1084 = vmatpush1.msra.mxu0 0.0
    %1085 = vmatprep.subr.mxu0 0.0
    %1086 = vmatpush1.msra.mxu0 0.0
    %1087 = vmatprep.subr.mxu0 0.0
    %1088 = vmatpush1.msra.mxu0 0.0
    %1089 = vmatprep.mubr.f32.mxu0 %v1023
    %1090 = vmatmul.mubr.f32.gmra.mrb[0].mxu0 %v987
    %v1091 = vpop.f32.mrb[0].mxu0
    %v1092 = vadd.f32 0.0, %v1091
    %v1093 = vpop.f32.mrb[0].mxu0
    %1094 = vdwg.mxu0
    %1096 = vset.pattern.permute.xlu0 0
    %1097 = vperm.xlu0 %1096, %v1092
    %v1098 = vpop.permute.xlu0 %1097
    %v1100 = vsub.f32 %v1092, %v1098
    %1101 = vset.pattern.permute.xlu0 22
    %1102 = vperm.xlu0 %1101, %v1092
    %v1103 = vpop.permute.xlu0 %1102
    %v1105 = vsub.f32 %v1092, %v1103
    %1106 = vset.pattern.permute.xlu0 44
    %1107 = vperm.xlu0 %1106, %v1092
    %v1108 = vpop.permute.xlu0 %1107
    %v1110 = vsub.f32 %v1092, %v1108
    %1111 = vset.pattern.permute.xlu0 10
    %1112 = vperm.xlu0 %1111, %v711
    %v1113 = vpop.permute.xlu0 %1112
    %v1115 = vadd.f32 %v1100, %v1113
    %1116 = vset.pattern.permute.xlu0 11
    %1117 = vperm.xlu0 %1116, %v711
    %v1118 = vpop.permute.xlu0 %1117
    %v1120 = vadd.f32 %v1105, %v1118
    %1121 = vset.pattern.permute.xlu0 12
    %1122 = vperm.xlu0 %1121, %v711
    %v1123 = vpop.permute.xlu0 %1122
    %v1125 = vadd.f32 %v1110, %v1123
    %v1126 = vand.u32 2147483647, %v1125
    %v1127 = vmax.f32 %v1126, 1e-06
    %vm1128 = vcmp.ge.f32.partialorder %v1125, 0.0
    %v1129 = vsub.f32 0.0, %v1127
    %v1130 = vsel %vm1128, %v1127, %v1129
    %v1131 = vrcp.pop %v1130
    %1133 = vrot.lane.b32.xlu0 %v1131, 84
    %v1134 = vpop.permute.xlu0 %1133
    %v1136 = vmul.f32 %v1115, %v1134
    %1137 = vset.pattern.permute.xlu0 13
    %1138 = vperm.xlu0 %1137, %v711
    %v1139 = vpop.permute.xlu0 %1138
    %v1141 = vmul.f32 %v1136, %v1139
    %1142 = vrot.lane.b32.xlu0 %v1131, 106
    %v1143 = vpop.permute.xlu0 %1142
    %v1145 = vmul.f32 %v1120, %v1143
    %1146 = vset.pattern.permute.xlu0 14
    %1147 = vperm.xlu0 %1146, %v711
    %v1148 = vpop.permute.xlu0 %1147
    %v1150 = vmul.f32 %v1145, %v1148
    %1151 = vrot.lane.b32.xlu0 %v711, 113
    %v1152 = vpop.permute.xlu0 %1151
    %v1154 = vsub.f32 %v1141, %v1152
    %v1155 = vand.u32 2147483647, %v1154
    %v1156 = vsub.f32 %v1150, %v1152
    %v1157 = vand.u32 2147483647, %v1156
    %1159 = vrot.lane.b32.xlu0 %v1157, 106
    %v1160 = vpop.permute.xlu0 %1159
    %v1162 = vadd.f32 %v1155, %v1160
    %v1163 = vsel %vm815, %v1162, 0.0
    %1164 = vadd.xlane.f32.xlu0 %v1163
    %v1165 = vpop.xlane.xlu0 %1164
    %v1166 = vrot.slane %v1165, 4
    %v1167 = vadd.f32 %v1165, %v1166
    %v1168 = vrot.slane %v1167, 2
    %v1169 = vadd.f32 %v1167, %v1168
    %v1170 = vrot.slane %v1169, 1
    %v1171 = vadd.f32 %v1169, %v1170
    %s1172 = vtos %v1171
    %v1173 = vrcp.pop 352.0
    %s1174 = vtos %v1173
    %s1175 = smul.f32 %s1172, %s1174
    %v1176 = vld [vmem:[%s11] sm:$0xff]
    %v1177 = vld [vmem:[%s11 + $0x8] sm:$0xff]
    %v1178 = vld [vmem:[%s11 + $0x10] sm:$0xff]
    %v1179 = vld [vmem:[%s11 + $0x18] sm:$0xff]
    %1181 = vrot.lane.b32.xlu0 %v711, 21
    %v1182 = vpop.permute.xlu0 %1181
    %1183 = vrot.lane.b32.xlu0 %v713, 21
    %v1184 = vpop.permute.xlu0 %1183
    %vm1185 = vcmask 171008
    %v1186 = vsel %vm1185, %v1182, %v1184
    %vm1188 = vcmask 261120
    %v1190 = vsel %vm1188, %v762, 0
    %1192 = vmatprep.subr.mxu0 0.0
    %1193 = vmatpush1.msra.mxu0 %v1176
    %1194 = vmatprep.subr.mxu0 0.0
    %1195 = vmatpush1.msra.mxu0 %v1177
    %1196 = vmatprep.subr.mxu0 0.0
    %1197 = vmatpush1.msra.mxu0 %v1178
    %1198 = vmatprep.subr.mxu0 0.0
    %1199 = vmatpush1.msra.mxu0 %v1179
    %1200 = vmatprep.subr.mxu0 0.0
    %1201 = vmatpush1.msra.mxu0 0.0
    %1202 = vmatprep.subr.mxu0 0.0
    %1203 = vmatpush1.msra.mxu0 0.0
    %1204 = vmatprep.subr.mxu0 0.0
    %1205 = vmatpush1.msra.mxu0 0.0
    %1206 = vmatprep.subr.mxu0 0.0
    %1207 = vmatpush1.msra.mxu0 0.0
    %1208 = vmatprep.subr.mxu0 0.0
    %1209 = vmatpush1.msra.mxu0 0.0
    %1210 = vmatprep.subr.mxu0 0.0
    %1211 = vmatpush1.msra.mxu0 0.0
    %1212 = vmatprep.subr.mxu0 0.0
    %1213 = vmatpush1.msra.mxu0 0.0
    %1214 = vmatprep.subr.mxu0 0.0
    %1215 = vmatpush1.msra.mxu0 0.0
    %1216 = vmatprep.subr.mxu0 0.0
    %1217 = vmatpush1.msra.mxu0 0.0
    %1218 = vmatprep.subr.mxu0 0.0
    %1219 = vmatpush1.msra.mxu0 0.0
    %1220 = vmatprep.subr.mxu0 0.0
    %1221 = vmatpush1.msra.mxu0 0.0
    %1222 = vmatprep.subr.mxu0 0.0
    %1223 = vmatpush1.msra.mxu0 0.0
    %1224 = vmatprep.subr.mxu0 0.0
    %1225 = vmatpush1.msra.mxu0 0.0
    %1226 = vmatprep.subr.mxu0 0.0
    %1227 = vmatpush1.msra.mxu0 0.0
    %1228 = vmatprep.subr.mxu0 0.0
    %1229 = vmatpush1.msra.mxu0 0.0
    %1230 = vmatprep.subr.mxu0 0.0
    %1231 = vmatpush1.msra.mxu0 0.0
    %1232 = vmatprep.subr.mxu0 0.0
    %1233 = vmatpush1.msra.mxu0 0.0
    %1234 = vmatprep.subr.mxu0 0.0
    %1235 = vmatpush1.msra.mxu0 0.0
    %1236 = vmatprep.subr.mxu0 0.0
    %1237 = vmatpush1.msra.mxu0 0.0
    %1238 = vmatprep.subr.mxu0 0.0
    %1239 = vmatpush1.msra.mxu0 0.0
    %1240 = vmatprep.subr.mxu0 0.0
    %1241 = vmatpush1.msra.mxu0 0.0
    %1242 = vmatprep.subr.mxu0 0.0
    %1243 = vmatpush1.msra.mxu0 0.0
    %1244 = vmatprep.subr.mxu0 0.0
    %1245 = vmatpush1.msra.mxu0 0.0
    %1246 = vmatprep.subr.mxu0 0.0
    %1247 = vmatpush1.msra.mxu0 0.0
    %1248 = vmatprep.subr.mxu0 0.0
    %1249 = vmatpush1.msra.mxu0 0.0
    %1250 = vmatprep.subr.mxu0 0.0
    %1251 = vmatpush1.msra.mxu0 0.0
    %1252 = vmatprep.subr.mxu0 0.0
    %1253 = vmatpush1.msra.mxu0 0.0
    %1254 = vmatprep.subr.mxu0 0.0
    %1255 = vmatpush1.msra.mxu0 0.0
    %1256 = vmatprep.mubr.f32.mxu0 0.0
    %1257 = vmatmul.mubr.f32.gmra.mrb[0].mxu0 %v1190
    %v1258 = vpop.f32.mrb[0].mxu0
    %v1259 = vadd.f32 %v1186, %v1258
    %v1260 = vpop.f32.mrb[0].mxu0
    %1261 = vdwg.mxu0
    %v1262 = vld [vmem:[%s12] sm:$0xff]
    %v1263 = vld [vmem:[%s12 + $0x8] sm:$0xff]
    %v1264 = vld [vmem:[%s12 + $0x10] sm:$0xff]
    %v1265 = vld [vmem:[%s12 + $0x18] sm:$0xff]
    %v1266 = vld [vmem:[%s12 + $0x20] sm:$0xff]
    %v1267 = vld [vmem:[%s12 + $0x28] sm:$0xff]
    %v1268 = vld [vmem:[%s12 + $0x30] sm:$0xff]
    %v1269 = vld [vmem:[%s12 + $0x38] sm:$0xff]
    %v1271 = vsel %vm107, %v1259, 0
    %1273 = vmatprep.subr.mxu0 0.0
    %1274 = vmatpush1.msra.mxu0 %v1262
    %1275 = vmatprep.subr.mxu0 0.0
    %1276 = vmatpush1.msra.mxu0 %v1263
    %1277 = vmatprep.subr.mxu0 0.0
    %1278 = vmatpush1.msra.mxu0 %v1264
    %1279 = vmatprep.subr.mxu0 0.0
    %1280 = vmatpush1.msra.mxu0 %v1265
    %1281 = vmatprep.subr.mxu0 0.0
    %1282 = vmatpush1.msra.mxu0 %v1266
    %1283 = vmatprep.subr.mxu0 0.0
    %1284 = vmatpush1.msra.mxu0 %v1267
    %1285 = vmatprep.subr.mxu0 0.0
    %1286 = vmatpush1.msra.mxu0 %v1268
    %1287 = vmatprep.subr.mxu0 0.0
    %1288 = vmatpush1.msra.mxu0 %v1269
    %1289 = vmatprep.subr.mxu0 0.0
    %1290 = vmatpush1.msra.mxu0 0.0
    %1291 = vmatprep.subr.mxu0 0.0
    %1292 = vmatpush1.msra.mxu0 0.0
    %1293 = vmatprep.subr.mxu0 0.0
    %1294 = vmatpush1.msra.mxu0 0.0
    %1295 = vmatprep.subr.mxu0 0.0
    %1296 = vmatpush1.msra.mxu0 0.0
    %1297 = vmatprep.subr.mxu0 0.0
    %1298 = vmatpush1.msra.mxu0 0.0
    %1299 = vmatprep.subr.mxu0 0.0
    %1300 = vmatpush1.msra.mxu0 0.0
    %1301 = vmatprep.subr.mxu0 0.0
    %1302 = vmatpush1.msra.mxu0 0.0
    %1303 = vmatprep.subr.mxu0 0.0
    %1304 = vmatpush1.msra.mxu0 0.0
    %1305 = vmatprep.subr.mxu0 0.0
    %1306 = vmatpush1.msra.mxu0 0.0
    %1307 = vmatprep.subr.mxu0 0.0
    %1308 = vmatpush1.msra.mxu0 0.0
    %1309 = vmatprep.subr.mxu0 0.0
    %1310 = vmatpush1.msra.mxu0 0.0
    %1311 = vmatprep.subr.mxu0 0.0
    %1312 = vmatpush1.msra.mxu0 0.0
    %1313 = vmatprep.subr.mxu0 0.0
    %1314 = vmatpush1.msra.mxu0 0.0
    %1315 = vmatprep.subr.mxu0 0.0
    %1316 = vmatpush1.msra.mxu0 0.0
    %1317 = vmatprep.subr.mxu0 0.0
    %1318 = vmatpush1.msra.mxu0 0.0
    %1319 = vmatprep.subr.mxu0 0.0
    %1320 = vmatpush1.msra.mxu0 0.0
    %1321 = vmatprep.subr.mxu0 0.0
    %1322 = vmatpush1.msra.mxu0 0.0
    %1323 = vmatprep.subr.mxu0 0.0
    %1324 = vmatpush1.msra.mxu0 0.0
    %1325 = vmatprep.subr.mxu0 0.0
    %1326 = vmatpush1.msra.mxu0 0.0
    %1327 = vmatprep.subr.mxu0 0.0
    %1328 = vmatpush1.msra.mxu0 0.0
    %1329 = vmatprep.subr.mxu0 0.0
    %1330 = vmatpush1.msra.mxu0 0.0
    %1331 = vmatprep.subr.mxu0 0.0
    %1332 = vmatpush1.msra.mxu0 0.0
    %1333 = vmatprep.subr.mxu0 0.0
    %1334 = vmatpush1.msra.mxu0 0.0
    %1335 = vmatprep.subr.mxu0 0.0
    %1336 = vmatpush1.msra.mxu0 0.0
    %1337 = vmatprep.mubr.f32.mxu0 0.0
    %1338 = vmatmul.mubr.f32.gmra.mrb[0].mxu0 %v1271
    %v1339 = vpop.f32.mrb[0].mxu0
    %v1340 = vadd.f32 0.0, %v1339
    %v1341 = vpop.f32.mrb[0].mxu0
    %1342 = vdwg.mxu0
    %v1343 = vld [vmem:[%s13] sm:$0xff]
    %v1344 = vld [vmem:[%s13 + $0x8] sm:$0xff]
    %v1345 = vld [vmem:[%s13 + $0x10] sm:$0xff]
    %v1346 = vld [vmem:[%s13 + $0x18] sm:$0xff]
    %v1347 = vld [vmem:[%s13 + $0x20] sm:$0xff]
    %v1348 = vld [vmem:[%s13 + $0x28] sm:$0xff]
    %v1349 = vld [vmem:[%s13 + $0x30] sm:$0xff]
    %v1350 = vld [vmem:[%s13 + $0x38] sm:$0xff]
    %1351 = vmatprep.subr.mxu0 0.0
    %1352 = vmatpush1.msra.mxu0 %v1343
    %1353 = vmatprep.subr.mxu0 0.0
    %1354 = vmatpush1.msra.mxu0 %v1344
    %1355 = vmatprep.subr.mxu0 0.0
    %1356 = vmatpush1.msra.mxu0 %v1345
    %1357 = vmatprep.subr.mxu0 0.0
    %1358 = vmatpush1.msra.mxu0 %v1346
    %1359 = vmatprep.subr.mxu0 0.0
    %1360 = vmatpush1.msra.mxu0 %v1347
    %1361 = vmatprep.subr.mxu0 0.0
    %1362 = vmatpush1.msra.mxu0 %v1348
    %1363 = vmatprep.subr.mxu0 0.0
    %1364 = vmatpush1.msra.mxu0 %v1349
    %1365 = vmatprep.subr.mxu0 0.0
    %1366 = vmatpush1.msra.mxu0 %v1350
    %1367 = vmatprep.subr.mxu0 0.0
    %1368 = vmatpush1.msra.mxu0 0.0
    %1369 = vmatprep.subr.mxu0 0.0
    %1370 = vmatpush1.msra.mxu0 0.0
    %1371 = vmatprep.subr.mxu0 0.0
    %1372 = vmatpush1.msra.mxu0 0.0
    %1373 = vmatprep.subr.mxu0 0.0
    %1374 = vmatpush1.msra.mxu0 0.0
    %1375 = vmatprep.subr.mxu0 0.0
    %1376 = vmatpush1.msra.mxu0 0.0
    %1377 = vmatprep.subr.mxu0 0.0
    %1378 = vmatpush1.msra.mxu0 0.0
    %1379 = vmatprep.subr.mxu0 0.0
    %1380 = vmatpush1.msra.mxu0 0.0
    %1381 = vmatprep.subr.mxu0 0.0
    %1382 = vmatpush1.msra.mxu0 0.0
    %1383 = vmatprep.subr.mxu0 0.0
    %1384 = vmatpush1.msra.mxu0 0.0
    %1385 = vmatprep.subr.mxu0 0.0
    %1386 = vmatpush1.msra.mxu0 0.0
    %1387 = vmatprep.subr.mxu0 0.0
    %1388 = vmatpush1.msra.mxu0 0.0
    %1389 = vmatprep.subr.mxu0 0.0
    %1390 = vmatpush1.msra.mxu0 0.0
    %1391 = vmatprep.subr.mxu0 0.0
    %1392 = vmatpush1.msra.mxu0 0.0
    %1393 = vmatprep.subr.mxu0 0.0
    %1394 = vmatpush1.msra.mxu0 0.0
    %1395 = vmatprep.subr.mxu0 0.0
    %1396 = vmatpush1.msra.mxu0 0.0
    %1397 = vmatprep.subr.mxu0 0.0
    %1398 = vmatpush1.msra.mxu0 0.0
    %1399 = vmatprep.subr.mxu0 0.0
    %1400 = vmatpush1.msra.mxu0 0.0
    %1401 = vmatprep.subr.mxu0 0.0
    %1402 = vmatpush1.msra.mxu0 0.0
    %1403 = vmatprep.subr.mxu0 0.0
    %1404 = vmatpush1.msra.mxu0 0.0
    %1405 = vmatprep.subr.mxu0 0.0
    %1406 = vmatpush1.msra.mxu0 0.0
    %1407 = vmatprep.subr.mxu0 0.0
    %1408 = vmatpush1.msra.mxu0 0.0
    %1409 = vmatprep.subr.mxu0 0.0
    %1410 = vmatpush1.msra.mxu0 0.0
    %1411 = vmatprep.subr.mxu0 0.0
    %1412 = vmatpush1.msra.mxu0 0.0
    %1413 = vmatprep.subr.mxu0 0.0
    %1414 = vmatpush1.msra.mxu0 0.0
    %1415 = vmatprep.mubr.f32.mxu0 0.0
    %1416 = vmatmul.mubr.f32.gmra.mrb[0].mxu0 %v1271
    %v1417 = vpop.f32.mrb[0].mxu0
    %v1418 = vadd.f32 0.0, %v1417
    %v1419 = vpop.f32.mrb[0].mxu0
    %1420 = vdwg.mxu0
    %v1421 = vmul.f32 %v1340, %v1340
    %1423 = vrot.lane.b32.xlu0 %v1421, 127
    %v1424 = vpop.permute.xlu0 %1423
    %v1426 = vadd.f32 %v1421, %v1424
    %1427 = vrot.lane.b32.xlu0 %v1421, 126
    %v1428 = vpop.permute.xlu0 %1427
    %v1430 = vadd.f32 %v1426, %v1428
    %v1431 = vadd.f32 %v1430, 1e-12
    %v1432 = vrsqrt.pop %v1431
    %v1433 = vmul.f32 %v1340, %v1432
    %1435 = vrot.lane.b32.xlu0 %v1432, 1
    %v1436 = vpop.permute.xlu0 %1435
    %v1438 = vmul.f32 %v1340, %v1436
    %1439 = vrot.lane.b32.xlu0 %v1432, 2
    %v1440 = vpop.permute.xlu0 %1439
    %v1442 = vmul.f32 %v1340, %v1440
    %1444 = vrot.lane.b32.xlu0 %v1340, 125
    %v1445 = vpop.permute.xlu0 %1444
    %v1447 = vmul.f32 %v1433, %v1445
    %v1448 = vmul.f32 %v1438, %v1445
    %1450 = vrot.lane.b32.xlu0 %v1448, 127
    %v1451 = vpop.permute.xlu0 %1450
    %v1453 = vadd.f32 %v1447, %v1451
    %v1454 = vmul.f32 %v1442, %v1445
    %1456 = vrot.lane.b32.xlu0 %v1454, 126
    %v1457 = vpop.permute.xlu0 %1456
    %v1459 = vadd.f32 %v1453, %v1457
    %v1460 = vmul.f32 %v1459, %v1433
    %1462 = vrot.lane.b32.xlu0 %v1460, 3
    %v1463 = vpop.permute.xlu0 %1462
    %v1465 = vsub.f32 %v1340, %v1463
    %1467 = vrot.lane.b32.xlu0 %v1438, 127
    %v1468 = vpop.permute.xlu0 %1467
    %v1470 = vmul.f32 %v1459, %v1468
    %1472 = vrot.lane.b32.xlu0 %v1470, 4
    %v1473 = vpop.permute.xlu0 %1472
    %v1475 = vsub.f32 %v1340, %v1473
    %1477 = vrot.lane.b32.xlu0 %v1442, 126
    %v1478 = vpop.permute.xlu0 %1477
    %v1480 = vmul.f32 %v1459, %v1478
    %1482 = vrot.lane.b32.xlu0 %v1480, 5
    %v1483 = vpop.permute.xlu0 %1482
    %v1485 = vsub.f32 %v1340, %v1483
    %v1486 = vmul.f32 %v1465, %v1465
    %v1487 = vmul.f32 %v1475, %v1475
    %1489 = vrot.lane.b32.xlu0 %v1487, 127
    %v1490 = vpop.permute.xlu0 %1489
    %v1492 = vadd.f32 %v1486, %v1490
    %v1493 = vmul.f32 %v1485, %v1485
    %1495 = vrot.lane.b32.xlu0 %v1493, 126
    %v1496 = vpop.permute.xlu0 %1495
    %v1498 = vadd.f32 %v1492, %v1496
    %v1499 = vadd.f32 %v1498, 1e-12
    %v1500 = vrsqrt.pop %v1499
    %v1501 = vmul.f32 %v1465, %v1500
    %1503 = vrot.lane.b32.xlu0 %v1500, 1
    %v1504 = vpop.permute.xlu0 %1503
    %v1506 = vmul.f32 %v1475, %v1504
    %1507 = vrot.lane.b32.xlu0 %v1500, 2
    %v1508 = vpop.permute.xlu0 %1507
    %v1510 = vmul.f32 %v1485, %v1508
    %1512 = vrot.lane.b32.xlu0 %v1510, 124
    %v1513 = vpop.permute.xlu0 %1512
    %v1515 = vmul.f32 %v1438, %v1513
    %1517 = vrot.lane.b32.xlu0 %v1506, 126
    %v1518 = vpop.permute.xlu0 %1517
    %v1520 = vmul.f32 %v1442, %v1518
    %1522 = vrot.lane.b32.xlu0 %v1520, 127
    %v1523 = vpop.permute.xlu0 %1522
    %v1525 = vsub.f32 %v1515, %v1523
    %1527 = vrot.lane.b32.xlu0 %v1501, 127
    %v1528 = vpop.permute.xlu0 %1527
    %v1530 = vmul.f32 %v1442, %v1528
    %1531 = vrot.lane.b32.xlu0 %v1510, 123
    %v1532 = vpop.permute.xlu0 %1531
    %v1534 = vmul.f32 %v1433, %v1532
    %1536 = vrot.lane.b32.xlu0 %v1534, 2
    %v1537 = vpop.permute.xlu0 %1536
    %v1539 = vsub.f32 %v1530, %v1537
    %1540 = vrot.lane.b32.xlu0 %v1506, 124
    %v1541 = vpop.permute.xlu0 %1540
    %v1543 = vmul.f32 %v1433, %v1541
    %1544 = vrot.lane.b32.xlu0 %v1501, 126
    %v1545 = vpop.permute.xlu0 %1544
    %v1547 = vmul.f32 %v1438, %v1545
    %1549 = vrot.lane.b32.xlu0 %v1547, 127
    %v1550 = vpop.permute.xlu0 %1549
    %v1552 = vsub.f32 %v1543, %v1550
    %v1553 = vmul.f32 %v831, %v1433
    %1554 = vrot.lane.b32.xlu0 %v1501, 19
    %v1555 = vpop.permute.xlu0 %1554
    %v1557 = vmul.f32 %v836, %v1555
    %1559 = vrot.lane.b32.xlu0 %v1557, 106
    %v1560 = vpop.permute.xlu0 %1559
    %v1562 = vadd.f32 %v1553, %v1560
    %1564 = vrot.lane.b32.xlu0 %v1525, 43
    %v1565 = vpop.permute.xlu0 %1564
    %v1567 = vmul.f32 %v840, %v1565
    %1569 = vrot.lane.b32.xlu0 %v1567, 84
    %v1570 = vpop.permute.xlu0 %1569
    %v1572 = vadd.f32 %v1562, %v1570
    %v1573 = vmul.f32 %v831, %v1468
    %1574 = vrot.lane.b32.xlu0 %v1506, 18
    %v1575 = vpop.permute.xlu0 %1574
    %v1577 = vmul.f32 %v836, %v1575
    %1579 = vrot.lane.b32.xlu0 %v1577, 106
    %v1580 = vpop.permute.xlu0 %1579
    %v1582 = vadd.f32 %v1573, %v1580
    %1584 = vrot.lane.b32.xlu0 %v1539, 42
    %v1585 = vpop.permute.xlu0 %1584
    %v1587 = vmul.f32 %v840, %v1585
    %1589 = vrot.lane.b32.xlu0 %v1587, 84
    %v1590 = vpop.permute.xlu0 %1589
    %v1592 = vadd.f32 %v1582, %v1590
    %v1593 = vmul.f32 %v831, %v1478
    %1594 = vrot.lane.b32.xlu0 %v1510, 17
    %v1595 = vpop.permute.xlu0 %1594
    %v1597 = vmul.f32 %v836, %v1595
    %1599 = vrot.lane.b32.xlu0 %v1597, 106
    %v1600 = vpop.permute.xlu0 %1599
    %v1602 = vadd.f32 %v1593, %v1600
    %1604 = vrot.lane.b32.xlu0 %v1552, 44
    %v1605 = vpop.permute.xlu0 %1604
    %v1607 = vmul.f32 %v840, %v1605
    %1609 = vrot.lane.b32.xlu0 %v1607, 84
    %v1610 = vpop.permute.xlu0 %1609
    %v1612 = vadd.f32 %v1602, %v1610
    %1614 = vrot.lane.b32.xlu0 %v1433, 66
    %v1615 = vpop.permute.xlu0 %1614
    %v1617 = vmul.f32 %v901, %v1615
    %1618 = vrot.lane.b32.xlu0 %v1501, 85
    %v1619 = vpop.permute.xlu0 %1618
    %v1621 = vmul.f32 %v906, %v1619
    %1623 = vrot.lane.b32.xlu0 %v1621, 106
    %v1624 = vpop.permute.xlu0 %1623
    %v1626 = vadd.f32 %v1617, %v1624
    %1627 = vrot.lane.b32.xlu0 %v1525, 109
    %v1628 = vpop.permute.xlu0 %1627
    %v1630 = vmul.f32 %v910, %v1628
    %1632 = vrot.lane.b32.xlu0 %v1630, 84
    %v1633 = vpop.permute.xlu0 %1632
    %v1635 = vadd.f32 %v1626, %v1633
    %1636 = vrot.lane.b32.xlu0 %v1438, 65
    %v1637 = vpop.permute.xlu0 %1636
    %v1639 = vmul.f32 %v901, %v1637
    %1640 = vrot.lane.b32.xlu0 %v1506, 84
    %v1641 = vpop.permute.xlu0 %1640
    %v1643 = vmul.f32 %v906, %v1641
    %1645 = vrot.lane.b32.xlu0 %v1643, 106
    %v1646 = vpop.permute.xlu0 %1645
    %v1648 = vadd.f32 %v1639, %v1646
    %1649 = vrot.lane.b32.xlu0 %v1539, 108
    %v1650 = vpop.permute.xlu0 %1649
    %v1652 = vmul.f32 %v910, %v1650
    %1654 = vrot.lane.b32.xlu0 %v1652, 84
    %v1655 = vpop.permute.xlu0 %1654
    %v1657 = vadd.f32 %v1648, %v1655
    %1658 = vrot.lane.b32.xlu0 %v1442, 64
    %v1659 = vpop.permute.xlu0 %1658
    %v1661 = vmul.f32 %v901, %v1659
    %1662 = vrot.lane.b32.xlu0 %v1510, 83
    %v1663 = vpop.permute.xlu0 %1662
    %v1665 = vmul.f32 %v906, %v1663
    %1667 = vrot.lane.b32.xlu0 %v1665, 106
    %v1668 = vpop.permute.xlu0 %1667
    %v1670 = vadd.f32 %v1661, %v1668
    %1671 = vrot.lane.b32.xlu0 %v1552, 110
    %v1672 = vpop.permute.xlu0 %1671
    %v1674 = vmul.f32 %v910, %v1672
    %1676 = vrot.lane.b32.xlu0 %v1674, 84
    %v1677 = vpop.permute.xlu0 %1676
    %v1679 = vadd.f32 %v1670, %v1677
    %1680 = vrot.lane.b32.xlu0 %v1433, 22
    %v1681 = vpop.permute.xlu0 %1680
    %v1683 = vmul.f32 %v931, %v1681
    %1684 = vrot.lane.b32.xlu0 %v1501, 41
    %v1685 = vpop.permute.xlu0 %1684
    %v1687 = vmul.f32 %v949, %v1685
    %1689 = vrot.lane.b32.xlu0 %v1687, 106
    %v1690 = vpop.permute.xlu0 %1689
    %v1692 = vadd.f32 %v1683, %v1690
    %1693 = vrot.lane.b32.xlu0 %v1525, 127
    %v1694 = vpop.permute.xlu0 %1693
    %v1696 = vmul.f32 %v962, %v1694
    %1698 = vrot.lane.b32.xlu0 %v1696, 22
    %v1699 = vpop.permute.xlu0 %1698
    %v1701 = vadd.f32 %v1692, %v1699
    %1702 = vrot.lane.b32.xlu0 %v1438, 21
    %v1703 = vpop.permute.xlu0 %1702
    %v1705 = vmul.f32 %v931, %v1703
    %1706 = vrot.lane.b32.xlu0 %v1506, 40
    %v1707 = vpop.permute.xlu0 %1706
    %v1709 = vmul.f32 %v949, %v1707
    %1711 = vrot.lane.b32.xlu0 %v1709, 106
    %v1712 = vpop.permute.xlu0 %1711
    %v1714 = vadd.f32 %v1705, %v1712
    %1715 = vrot.lane.b32.xlu0 %v1539, 126
    %v1716 = vpop.permute.xlu0 %1715
    %v1718 = vmul.f32 %v962, %v1716
    %1720 = vrot.lane.b32.xlu0 %v1718, 22
    %v1721 = vpop.permute.xlu0 %1720
    %v1723 = vadd.f32 %v1714, %v1721
    %1724 = vrot.lane.b32.xlu0 %v1442, 20
    %v1725 = vpop.permute.xlu0 %1724
    %v1727 = vmul.f32 %v931, %v1725
    %1728 = vrot.lane.b32.xlu0 %v1510, 39
    %v1729 = vpop.permute.xlu0 %1728
    %v1731 = vmul.f32 %v949, %v1729
    %1733 = vrot.lane.b32.xlu0 %v1731, 106
    %v1734 = vpop.permute.xlu0 %1733
    %v1736 = vadd.f32 %v1727, %v1734
    %v1737 = vmul.f32 %v962, %v1552
    %1739 = vrot.lane.b32.xlu0 %v1737, 22
    %v1740 = vpop.permute.xlu0 %1739
    %v1742 = vadd.f32 %v1736, %v1740
    %v1743 = vmul.f32 %v831, %v1418
    %1745 = vrot.lane.b32.xlu0 %v1418, 21
    %v1746 = vpop.permute.xlu0 %1745
    %v1748 = vmul.f32 %v836, %v1746
    %1750 = vrot.lane.b32.xlu0 %v1748, 106
    %v1751 = vpop.permute.xlu0 %1750
    %v1753 = vadd.f32 %v1743, %v1751
    %1754 = vrot.lane.b32.xlu0 %v1418, 42
    %v1755 = vpop.permute.xlu0 %1754
    %v1757 = vmul.f32 %v840, %v1755
    %1759 = vrot.lane.b32.xlu0 %v1757, 84
    %v1760 = vpop.permute.xlu0 %1759
    %v1762 = vadd.f32 %v1753, %v1760
    %1763 = vrot.lane.b32.xlu0 %v711, 118
    %v1764 = vpop.permute.xlu0 %1763
    %v1766 = vadd.f32 %v1762, %v1764
    %1767 = vrot.lane.b32.xlu0 %v1418, 66
    %v1768 = vpop.permute.xlu0 %1767
    %v1770 = vmul.f32 %v901, %v1768
    %1771 = vrot.lane.b32.xlu0 %v1418, 87
    %v1772 = vpop.permute.xlu0 %1771
    %v1774 = vmul.f32 %v906, %v1772
    %1776 = vrot.lane.b32.xlu0 %v1774, 106
    %v1777 = vpop.permute.xlu0 %1776
    %v1779 = vadd.f32 %v1770, %v1777
    %1780 = vrot.lane.b32.xlu0 %v1418, 108
    %v1781 = vpop.permute.xlu0 %1780
    %v1783 = vmul.f32 %v910, %v1781
    %1785 = vrot.lane.b32.xlu0 %v1783, 84
    %v1786 = vpop.permute.xlu0 %1785
    %v1788 = vadd.f32 %v1779, %v1786
    %1789 = vrot.lane.b32.xlu0 %v711, 55
    %v1790 = vpop.permute.xlu0 %1789
    %v1792 = vadd.f32 %v1788, %v1790
    %1793 = vrot.lane.b32.xlu0 %v1418, 22
    %v1794 = vpop.permute.xlu0 %1793
    %v1796 = vmul.f32 %v931, %v1794
    %1797 = vrot.lane.b32.xlu0 %v1418, 43
    %v1798 = vpop.permute.xlu0 %1797
    %v1800 = vmul.f32 %v949, %v1798
    %1802 = vrot.lane.b32.xlu0 %v1800, 106
    %v1803 = vpop.permute.xlu0 %1802
    %v1805 = vadd.f32 %v1796, %v1803
    %1806 = vrot.lane.b32.xlu0 %v1418, 126
    %v1807 = vpop.permute.xlu0 %1806
    %v1809 = vmul.f32 %v962, %v1807
    %1811 = vrot.lane.b32.xlu0 %v1809, 22
    %v1812 = vpop.permute.xlu0 %1811
    %v1814 = vadd.f32 %v1805, %v1812
    %1815 = vrot.lane.b32.xlu0 %v711, 10
    %v1816 = vpop.permute.xlu0 %1815
    %v1818 = vadd.f32 %v1814, %v1816
    %1820 = vset.pattern.permute.xlu0 0
    %1821 = vperm.xlu0 %1820, %v1572
    %v1822 = vpop.permute.xlu0 %1821
    %v1824 = vmul.f32 %v1822, %v711
    %1826 = vset.pattern.permute.xlu0 0
    %1827 = vperm.xlu0 %1826, %v1592
    %v1828 = vpop.permute.xlu0 %1827
    %v1830 = vmul.f32 %v1828, %v711
    %1832 = vrot.lane.b32.xlu0 %v1830, 120
    %v1833 = vpop.permute.xlu0 %1832
    %v1835 = vadd.f32 %v1824, %v1833
    %1837 = vset.pattern.permute.xlu0 0
    %1838 = vperm.xlu0 %1837, %v1612
    %v1839 = vpop.permute.xlu0 %1838
    %v1841 = vmul.f32 %v1839, %v711
    %1843 = vrot.lane.b32.xlu0 %v1841, 112
    %v1844 = vpop.permute.xlu0 %1843
    %v1846 = vadd.f32 %v1835, %v1844
    %1848 = vset.pattern.permute.xlu0 0
    %1849 = vperm.xlu0 %1848, %v1766
    %v1850 = vpop.permute.xlu0 %1849
    %v1852 = vadd.f32 %v1846, %v1850
    %1854 = vset.pattern.permute.xlu0 66
    %1855 = vperm.xlu0 %1854, %v1635
    %v1856 = vpop.permute.xlu0 %1855
    %v1858 = vmul.f32 %v1856, %v711
    %1860 = vset.pattern.permute.xlu0 66
    %1861 = vperm.xlu0 %1860, %v1657
    %v1862 = vpop.permute.xlu0 %1861
    %v1864 = vmul.f32 %v1862, %v711
    %1866 = vrot.lane.b32.xlu0 %v1864, 120
    %v1867 = vpop.permute.xlu0 %1866
    %v1869 = vadd.f32 %v1858, %v1867
    %1871 = vset.pattern.permute.xlu0 66
    %1872 = vperm.xlu0 %1871, %v1679
    %v1873 = vpop.permute.xlu0 %1872
    %v1875 = vmul.f32 %v1873, %v711
    %1877 = vrot.lane.b32.xlu0 %v1875, 112
    %v1878 = vpop.permute.xlu0 %1877
    %v1880 = vadd.f32 %v1869, %v1878
    %1882 = vset.pattern.permute.xlu0 66
    %1883 = vperm.xlu0 %1882, %v1792
    %v1884 = vpop.permute.xlu0 %1883
    %v1886 = vadd.f32 %v1880, %v1884
    %1888 = vset.pattern.permute.xlu0 22
    %1889 = vperm.xlu0 %1888, %v1701
    %v1890 = vpop.permute.xlu0 %1889
    %v1892 = vmul.f32 %v1890, %v711
    %1894 = vset.pattern.permute.xlu0 22
    %1895 = vperm.xlu0 %1894, %v1723
    %v1896 = vpop.permute.xlu0 %1895
    %v1898 = vmul.f32 %v1896, %v711
    %1900 = vrot.lane.b32.xlu0 %v1898, 120
    %v1901 = vpop.permute.xlu0 %1900
    %v1903 = vadd.f32 %v1892, %v1901
    %1905 = vset.pattern.permute.xlu0 22
    %1906 = vperm.xlu0 %1905, %v1742
    %v1907 = vpop.permute.xlu0 %1906
    %v1909 = vmul.f32 %v1907, %v711
    %1911 = vrot.lane.b32.xlu0 %v1909, 112
    %v1912 = vpop.permute.xlu0 %1911
    %v1914 = vadd.f32 %v1903, %v1912
    %1916 = vset.pattern.permute.xlu0 22
    %1917 = vperm.xlu0 %1916, %v1818
    %v1918 = vpop.permute.xlu0 %1917
    %v1920 = vadd.f32 %v1914, %v1918
    %v1921 = vand.u32 2147483647, %v1920
    %v1922 = vmax.f32 %v1921, 1e-06
    %vm1923 = vcmp.ge.f32.partialorder %v1920, 0.0
    %v1924 = vsub.f32 0.0, %v1922
    %v1925 = vsel %vm1923, %v1922, %v1924
    %v1926 = vrcp.pop %v1925
    %v1927 = vmul.f32 %v1852, %v1926
    %v1928 = vmul.f32 %v1927, %v1139
    %v1929 = vmul.f32 %v1886, %v1926
    %v1930 = vmul.f32 %v1929, %v1148
    %1931 = vrot.lane.b32.xlu0 %v711, 104
    %v1932 = vpop.permute.xlu0 %1931
    %v1934 = vsub.f32 %v1928, %v1932
    %v1935 = vand.u32 2147483647, %v1934
    %1936 = vrot.lane.b32.xlu0 %v711, 96
    %v1937 = vpop.permute.xlu0 %1936
    %v1939 = vsub.f32 %v1930, %v1937
    %v1940 = vand.u32 2147483647, %v1939
    %v1941 = vadd.f32 %v1935, %v1940
    %1943 = vrot.lane.b32.xlu0 %v1941, 40
    %v1944 = vpop.permute.xlu0 %1943
    %v1946 = vmul.f32 %v711, %v1944
    %1948 = vrot.lane.b32.xlu0 %v1946, 29
    %v1949 = vpop.permute.xlu0 %1948
    %vm1951 = vcmask 64512
    %v1952 = vsel %vm1951, %v1949, 0.0
    %1953 = vadd.xlane.f32.xlu0 %v1952
    %v1954 = vpop.xlane.xlu0 %1953
    %v1955 = vrot.slane %v1954, 4
    %v1956 = vadd.f32 %v1954, %v1955
    %v1957 = vrot.slane %v1956, 2
    %v1958 = vadd.f32 %v1956, %v1957
    %v1959 = vrot.slane %v1958, 1
    %v1960 = vadd.f32 %v1958, %v1959
    %s1961 = vtos %v1960
    %1962 = vrot.lane.b32.xlu0 %v711, 29
    %v1963 = vpop.permute.xlu0 %1962
    %v1965 = vsel %vm1951, %v1963, 0.0
    %1966 = vadd.xlane.f32.xlu0 %v1965
    %v1967 = vpop.xlane.xlu0 %1966
    %v1968 = vrot.slane %v1967, 4
    %v1969 = vadd.f32 %v1967, %v1968
    %v1970 = vrot.slane %v1969, 2
    %v1971 = vadd.f32 %v1969, %v1970
    %v1972 = vrot.slane %v1971, 1
    %v1973 = vadd.f32 %v1971, %v1972
    %s1974 = vtos %v1973
    %s1975 = smul.f32 %s1974, 2.0
    %s1976 = sadd.f32 %s1975, 1e-09
    %v1977 = vstv %s1976
    %v1978 = vrcp.pop %v1977
    %s1979 = vtos %v1978
    %s1980 = smul.f32 %s1961, %s1979
    %vm1981 = vcmp.eq.s32.totalorder %v396, 0
    %v1982 = vstv %s360
    %v1983 = vsel %vm1981, %v1982, 0.0
    %vm1984 = vcmp.eq.s32.totalorder %v396, 1
    %v1985 = vstv %s392
    %v1986 = vsel %vm1984, %v1985, 0.0
    %v1987 = vadd.f32 %v1983, %v1986
    %vm1988 = vcmp.eq.s32.totalorder %v396, 2
    %v1989 = vstv %s1175
    %v1990 = vsel %vm1988, %v1989, 0.0
    %v1991 = vadd.f32 %v1987, %v1990
    %vm1992 = vcmp.eq.s32.totalorder %v396, 3
    %v1993 = vstv %s828
    %v1994 = vsel %vm1992, %v1993, 0.0
    %v1995 = vadd.f32 %v1991, %v1994
    %vm1996 = vcmp.eq.s32.totalorder %v396, 4
    %v1997 = vstv %s1980
    %v1998 = vsel %vm1996, %v1997, 0.0
    %v1999 = vadd.f32 %v1995, %v1998
    %2000 = vst [vmem:[#allocation2] sm:$0x1] %v1999
    // Predicated region
    $region62: #{tpu_custom_call.1} parent=1 // pred_check
      _
    $region63: #{tpu_custom_call.1} parent=1 // pred_check_branch
      %2002 = sbr.rel (0) target = $region65
    $region64: #{tpu_custom_call.1} parent=1 // pred_region
      %s2004 = ssub.s32 16, 16
      %2005 = vsyncadd [#allocation3], %s2004
      %s2007 = sshll.u32 [#allocation2], 4
      %s2008 = int_to_ptr.vmem [resolvable:$true] %s2007
      %2010 = dma.vmem_to_hbm [thread:$0]  %s2008, 16, %s15, [#allocation3]
    $region65: #{tpu_custom_call.1} parent=1 // pred_fallthru
      _
    // Predicated region
    $region66: #{tpu_custom_call.1} parent=1 // pred_check
      _
    $region67: #{tpu_custom_call.1} parent=1 // pred_check_branch
      %2012 = sbr.rel (0) target = $region69
    $region68: #{tpu_custom_call.1} parent=1 // pred_region
      %2013 = dma.done [#allocation3], 16
    $region69: #{tpu_custom_call.1} parent=1 // pred_fallthru
      _
    %2014 = vsyncpa [#allocation3], 1

</llo_original>
